<compile_context>
chip_gen: v5e
topology: v5e:2x2
jax: 0.10.0
libtpu: 0.0.40
codegen_flags: <defaults>
</compile_context>

<pallas_src>
import functools

import jax
import jax.numpy as jnp
from jax.experimental import pallas as pl
from jax.experimental.pallas import tpu as pltpu

CNN_DIM = 512


def _round_up(x, m):
    return (x + m - 1) // m * m


def _vmem_cap_bytes():
    try:
        return int(pltpu.get_tpu_info().vmem_capacity_bytes)
    except Exception:
        return 64 * 2**20          # conservative default = v7x per-TC physical VMEM


def _bf16_eup_supported():
    # bf16 EUP/VPU path exists on v6e / v7x; v5e (and older) lack it -> keep f32 exp there.
    try:
        kind = jax.devices()[0].device_kind.lower()
    except Exception:
        return False
    return not any(tag in kind for tag in ("v2", "v3", "v4", "v5"))


# ----------------------------------------------------------------------------
# Kernel A: fused per-node feature pipeline + GAT input projection + attention scores.
#   h      = ReLU(x_cnn @ W_cnn_fused + (LN(x_feat) * feat_scale) @ W_feat + b_fused)
#   [xp | a_dst] = h @ [Wg | Wg@att_dst]          one MXU matmul     (xp stored bf16)
#   a_srcT = w_asrc @ h^T  (node-minor output -> lane-dense, no transposes needed later)
# ----------------------------------------------------------------------------
def feat_proj_kernel(x_ref, feat_scale_ref, w_cnn_ref, w_feat_ref, b_ref,
                     w_ext_ref, w_asrc_ref, xp_ref, adst_ref, asrcT_ref, *, hc):
    x = x_ref[...]
    x_cnn = x[:, :CNN_DIM]
    x_feat = x[:, CNN_DIM:]

    # LayerNorm over handcrafted + asymmetry features (affine folded with pre-BN scale).
    mu = jnp.mean(x_feat, axis=-1, keepdims=True)
    var = jnp.mean((x_feat - mu) ** 2, axis=-1, keepdims=True)
    xn = (x_feat - mu) * jax.lax.rsqrt(var + 1e-5)

    # cnn_bn + cnn_linear + pre-BN + pre-Linear folded into two matmuls + one bias.
    h = (jnp.dot(x_cnn, w_cnn_ref[...], preferred_element_type=jnp.float32)
         + jnp.dot(xn * feat_scale_ref[...], w_feat_ref[...],
                   preferred_element_type=jnp.float32)
         + b_ref[...])
    h = jnp.maximum(h, 0.0)          # ReLU; Dropout = identity (eval)

    # GATConv input projection fused with dst attention scores (one MXU push).
    out = jnp.dot(h, w_ext_ref[...], preferred_element_type=jnp.float32)   # [T, hc+heads]
    xp_ref[...] = out[:, :hc].astype(xp_ref.dtype)
    adst_ref[...] = out[:, hc:]                                            # [T, heads]
    # src scores with the node axis minor -> lane-dense output, ready for row-broadcast in B.
    asrcT_ref[...] = jnp.einsum("hk,nk->hn", w_asrc_ref[...], h,
                                preferred_element_type=jnp.float32)        # [heads, T]


# ----------------------------------------------------------------------------
# Kernel B: GATConv edge softmax + aggregation + BatchNorm (folded) + ELU.
#   Blocked (flash-style) online softmax over source-node tiles:
#     e[i, j] = LeakyReLU(a_dst[i] + a_src[j])  masked by adj[i, j]
#     alpha   = softmax_j(e);   out[i] = sum_j alpha[i, j] * xp[j]
#   Grid = (dst_tiles [parallel], src_tiles [arbitrary, last]); m/l/acc carried in VMEM.
#   Blocks with zero edges are skipped via the scalar-prefetched nnz table.
# ----------------------------------------------------------------------------
def gat_attention_kernel(nnz_ref, adst_ref, asrcT_ref, xp_ref, adj_ref,
                         bias_ref, bns_ref, bnb_ref, o_ref,
                         m_ref, l_ref, acc_ref, *, heads, ch, use_bf16_exp):
    i = pl.program_id(0)
    j = pl.program_id(1)

    @pl.when(j == 0)
    def _():
        m_ref[...] = jnp.full_like(m_ref, -1e30)
        l_ref[...] = jnp.zeros_like(l_ref)
        acc_ref[...] = jnp.zeros_like(acc_ref)

    # Skip fully-masked (dst-tile, src-tile) blocks: no exp, no matmul, no scratch update.
    @pl.when(nnz_ref[i, j] > 0)
    def _():
        maskf = adj_ref[...].astype(jnp.float32)      # int8 {0,1} -> f32 once per block
        edge = maskf > 0.0
        maskb = maskf.astype(jnp.bfloat16) if use_bf16_exp else None
        a_dst = adst_ref[...]                         # [TD, heads] f32
        a_srcT = asrcT_ref[...]                       # [heads, TS] f32
        xp = xp_ref[...]                              # [TS, heads*ch] bf16
        td = acc_ref.shape[0]

        m_old = m_ref[...]
        l_old = l_ref[...]
        m_cols, l_cols, corr_cols, pv_cols = [], [], [], []
        for hd in range(heads):
            e = a_dst[:, hd:hd + 1] + a_srcT[hd:hd + 1, :]        # [TD, TS]
            e = jnp.where(e > 0, e, 0.2 * e)                      # LeakyReLU(0.2)
            e = jnp.where(edge, e, -1e30)                         # mask non-edges
            mo = m_old[:, hd:hd + 1]
            mn = jnp.maximum(mo, jnp.max(e, axis=-1, keepdims=True))
            corr = jnp.exp(mo - mn)
            # NOTE: keep the mask multiply — in a *blocked* softmax a fully-masked row
            # would otherwise contribute exp(0)=1 per non-edge (running max == mask value).
            if use_bf16_exp:                                       # v6e/v7x: bf16 EUP exp
                p16 = jnp.exp((e - mn).astype(jnp.bfloat16)) * maskb
                p_sum = jnp.sum(p16.astype(jnp.float32), axis=-1, keepdims=True)
                p_mm = p16
            else:                                                  # v5e: f32 EUP only
                p = jnp.exp(e - mn) * maskf
                p_sum = jnp.sum(p, axis=-1, keepdims=True)
                p_mm = p.astype(xp.dtype)
            m_cols.append(mn)
            l_cols.append(corr * l_old[:, hd:hd + 1] + p_sum)
            corr_cols.append(corr)
            pv_cols.append(jnp.dot(p_mm, xp[:, hd * ch:(hd + 1) * ch],
                                   preferred_element_type=jnp.float32))
        m_ref[...] = jnp.concatenate(m_cols, axis=-1)
        l_ref[...] = jnp.concatenate(l_cols, axis=-1)
        # Single lane-dense accumulator update (no per-head 32-lane masked RMWs).
        corr_full = jnp.concatenate(
            [jnp.broadcast_to(c, (td, ch)) for c in corr_cols], axis=-1)   # [TD, hc]
        acc_ref[...] = corr_full * acc_ref[...] + jnp.concatenate(pv_cols, axis=-1)

    # TODO(synk): attention-coefficient dropout (training-only) omitted — inference mode.
    @pl.when(j == pl.num_programs(1) - 1)
    def _():
        td = acc_ref.shape[0]
        inv = pl.reciprocal(jnp.maximum(l_ref[...], 1e-30), approx=False)   # [TD, heads]
        inv_full = jnp.concatenate(
            [jnp.broadcast_to(inv[:, hd:hd + 1], (td, ch)) for hd in range(heads)], axis=-1)
        g = acc_ref[...] * inv_full + bias_ref[...]      # GATConv bias (concat=True)
        g = g * bns_ref[...] + bnb_ref[...]              # norm1 (BatchNorm, folded)
        g = jnp.where(g > 0, g, jnp.exp(jnp.minimum(g, 0.0)) - 1.0)        # ELU
        o_ref[...] = g.astype(o_ref.dtype)               # bf16 activations to HBM


# ----------------------------------------------------------------------------
# Kernel C: global_mean_pool as a node-tiled accumulating matmul + MLP head.
# ----------------------------------------------------------------------------
def pool_mlp_kernel(pool_ref, g_ref, wm1_ref, bm1_ref, wm2_ref, bm2_ref, o_ref, acc_ref):
    k = pl.program_id(0)

    @pl.when(k == 0)
    def _():
        acc_ref[...] = jnp.zeros_like(acc_ref)

    acc_ref[...] += jnp.dot(pool_ref[...], g_ref[...].astype(jnp.float32),
                            preferred_element_type=jnp.float32)

    @pl.when(k == pl.num_programs(0) - 1)
    def _():
        h1 = jnp.dot(acc_ref[...], wm1_ref[...], preferred_element_type=jnp.float32) + bm1_ref[...]
        h1 = jnp.maximum(h1, 0.0)       # ReLU; Dropout = identity (eval)
        o_ref[...] = jnp.dot(h1, wm2_ref[...], preferred_element_type=jnp.float32) + bm2_ref[...]


# ----------------------------------------------------------------------------
# Host-side folding of BN / LayerNorm affines, the 512->16->hidden chain, and the
# GAT attention-score projections.
# ----------------------------------------------------------------------------
def _fold_bn(gamma, beta, mean, var, eps=1e-5):
    scale = gamma * jax.lax.rsqrt(var + eps)
    return scale, beta - mean * scale


def fold_params(p, hidden, heads):
    cnn_s, cnn_b = _fold_bn(p["cnn_g"], p["cnn_be"], p["cnn_m"], p["cnn_v"])
    pre_s, pre_b = _fold_bn(p["pre_g"], p["pre_be"], p["pre_m"], p["pre_v"])
    bn1_s, bn1_b = _fold_bn(p["bn1_g"], p["bn1_be"], p["bn1_m"], p["bn1_v"])

    pre_s_c, pre_b_c = pre_s[:16], pre_b[:16]
    pre_s_f, pre_b_f = pre_s[16:], pre_b[16:]
    wp_c, wp_f = p["wp"][:16], p["wp"][16:]

    # CNN path: (((x*s+b) @ W1 + b1) * s_c + b_c) @ wp_c  ==  x @ w_cnn + b_cnn
    w_cnn = (cnn_s[:, None] * p["w1"]) @ (pre_s_c[:, None] * wp_c)            # [512, hidden]
    b_cnn = ((cnn_b @ p["w1"] + p["b1"]) * pre_s_c + pre_b_c) @ wp_c          # [hidden]

    # Feature path: ((LN(xf)*ln_w+ln_b) * s_f + b_f) @ wp_f
    feat_scale = p["ln_w"] * pre_s_f                                          # [F]
    feat_shift = p["ln_b"] * pre_s_f + pre_b_f                                # [F]
    b_total = b_cnn + p["bp"] + feat_shift @ wp_f                             # [hidden]

    # GAT attention-score projections folded into the input projection:
    #   a_dst = xp @ att_dst = h @ (Wg @ att_dst)   ;   a_src = h @ (Wg @ att_src)^T
    wg = p["wg"]                                                              # [hidden, H*hidden]
    wg_h = wg.reshape(hidden, heads, hidden)
    w_adst = jnp.einsum("khc,hc->kh", wg_h, p["att_dst"])                     # [hidden, heads]
    w_asrc = jnp.einsum("khc,hc->hk", wg_h, p["att_src"])                     # [heads, hidden]
    w_ext = jnp.concatenate([wg, w_adst], axis=1)                             # [hidden, hc+heads]

    return dict(
        feat_scale=feat_scale[None, :], w_cnn=w_cnn, w_feat=wp_f, b_total=b_total[None, :],
        w_ext=w_ext, w_asrc=w_asrc,
        gat_bias=p["gat_bias"][None, :], bn1_s=bn1_s[None, :], bn1_b=bn1_b[None, :],
        wm1=p["wm1"], bm1=p["bm1"][None, :], wm2=p["wm2"], bm2=p["bm2"][None, :],
    )


def init_params(key, in_channels, hidden, heads, out_channels):
    f_extra = in_channels - CNN_DIM
    d_pre = 16 + f_extra
    hc = heads * hidden
    ks = iter(jax.random.split(key, 32))
    nrm = lambda shape, s=0.1: s * jax.random.normal(next(ks), shape, jnp.float32)
    pos = lambda shape: 1.0 + 0.1 * jnp.abs(jax.random.normal(next(ks), shape, jnp.float32))
    return {
        # feat_norm: LayerNorm(f_extra)
        "ln_w": 1.0 + nrm((f_extra,)), "ln_b": nrm((f_extra,)),
        # cnn_bn: BatchNorm1d(512) (running stats)
        "cnn_g": 1.0 + nrm((CNN_DIM,)), "cnn_be": nrm((CNN_DIM,)),
        "cnn_m": nrm((CNN_DIM,)), "cnn_v": pos((CNN_DIM,)),
        # cnn_linear: 512 -> 16
        "w1": jax.random.normal(next(ks), (CNN_DIM, 16), jnp.float32) / jnp.sqrt(CNN_DIM),
        "b1": nrm((16,)),
        # pre: BatchNorm1d(16+F) + Linear(16+F -> hidden)
        "pre_g": 1.0 + nrm((d_pre,)), "pre_be": nrm((d_pre,)),
        "pre_m": nrm((d_pre,)), "pre_v": pos((d_pre,)),
        "wp": jax.random.normal(next(ks), (d_pre, hidden), jnp.float32) / jnp.sqrt(d_pre),
        "bp": nrm((hidden,)),
        # gat1: GATConv(hidden, hidden, heads)
        "wg": jax.random.normal(next(ks), (hidden, hc), jnp.float32) / jnp.sqrt(hidden),
        "att_src": nrm((heads, hidden)), "att_dst": nrm((heads, hidden)),
        "gat_bias": nrm((hc,)),
        # norm1: BatchNorm(hidden*heads)
        "bn1_g": 1.0 + nrm((hc,)), "bn1_be": nrm((hc,)),
        "bn1_m": nrm((hc,)), "bn1_v": pos((hc,)),
        # mlp head
        "wm1": jax.random.normal(next(ks), (hc, hidden), jnp.float32) / jnp.sqrt(hc),
        "bm1": jnp.zeros((hidden,), jnp.float32),
        "wm2": jax.random.normal(next(ks), (hidden, out_channels), jnp.float32) / jnp.sqrt(hidden),
        "bm2": jnp.zeros((out_channels,), jnp.float32),
    }


def gat_classifier_forward(p, x, edge_index, batch, *, hidden, heads, out_channels, num_graphs):
    n, d_in = x.shape
    f_extra = d_in - CNN_DIM
    hc = heads * hidden

    # Tiling: big dst tiles cut xp re-streaming (xp is re-read once per dst tile); 256-wide
    # src tiles keep block-skip granularity; small graphs use a single full-size tile.
    if n >= 256:
        n_pad = _round_up(n, 256)
        tile_s = 256
        tile_d = 512 if n_pad % 512 == 0 else 256
        tile_a = 256
    else:
        n_pad = _round_up(n, 32)
        tile_d = tile_s = tile_a = n_pad
    nt_d, nt_s, nt_a = n_pad // tile_d, n_pad // tile_s, n_pad // tile_a
    ng_pad = _round_up(num_graphs, 8)

    use_bf16_exp = _bf16_eup_supported()
    fp = fold_params(p, hidden, heads)

    # --- plain-JAX glue: padding, dense int8 edge mask (dst-major, + self loops),
    #     per-block edge counts (for block skipping), mean-pool matrix.
    # NOTE: duplicate edges collapse to a single 1 in the dense mask (differs from PyG for
    # multigraph inputs).
    x_p = jnp.zeros((n_pad, d_in), jnp.float32).at[:n].set(x)
    adj = jnp.zeros((n_pad, n_pad), jnp.int8)
    adj = adj.at[edge_index[1], edge_index[0]].set(jnp.int8(1))
    diag = jnp.arange(n_pad)
    adj = adj.at[diag, diag].set(jnp.int8(1))      # self loops (also on padded rows)
    blk_nnz = jnp.sum(adj.astype(jnp.int32).reshape(nt_d, tile_d, nt_s, tile_s),
                      axis=(1, 3))                 # [nt_d, nt_s] int32 (scalar prefetch)
    batch_p = jnp.full((n_pad,), -1, jnp.int32).at[:n].set(batch)
    onehot = (batch_p[None, :] == jnp.arange(ng_pad)[:, None]).astype(jnp.float32)
    pool = onehot / jnp.maximum(jnp.sum(onehot, axis=1, keepdims=True), 1.0)

    # --- VMEM budgeting (review: never request the full per-TC VMEM; v7x only has 64 MiB).
    vmem_cap = _vmem_cap_bytes()
    vmem_small = int(min(32 * 2**20, 3 * vmem_cap // 4))
    need_b = (2 * (tile_d * heads * 4 + heads * tile_s * 4 + tile_s * hc * 2
                   + tile_d * tile_s * 1 + 3 * hc * 4 + tile_d * hc * 2)      # double-buffered streams
              + 2 * tile_d * heads * 4 + tile_d * hc * 4                      # scratch m/l/acc
              + (8 << 20))                                                    # compiler headroom
    vmem_b = int(min(3 * vmem_cap // 4, max(32 * 2**20, need_b)))

    # --- Kernel A: feature pipeline + GAT projection + attention scores ---
    xp, a_dst, a_srcT = pl.pallas_call(
        functools.partial(feat_proj_kernel, hc=hc),
        out_shape=(jax.ShapeDtypeStruct((n_pad, hc), jnp.bfloat16),
                   jax.ShapeDtypeStruct((n_pad, heads), jnp.float32),
                   jax.ShapeDtypeStruct((heads, n_pad), jnp.float32)),
        grid=(nt_a,),
        in_specs=[
            pl.BlockSpec((tile_a, d_in), lambda i: (i, 0)),
            pl.BlockSpec((1, f_extra), lambda i: (0, 0)),
            pl.BlockSpec((CNN_DIM, hidden), lambda i: (0, 0)),
            pl.BlockSpec((f_extra, hidden), lambda i: (0, 0)),
            pl.BlockSpec((1, hidden), lambda i: (0, 0)),
            pl.BlockSpec((hidden, hc + heads), lambda i: (0, 0)),   # w_ext = [Wg | Wg@att_dst]
            pl.BlockSpec((heads, hidden), lambda i: (0, 0)),        # w_asrc
        ],
        out_specs=(pl.BlockSpec((tile_a, hc), lambda i: (i, 0)),
                   pl.BlockSpec((tile_a, heads), lambda i: (i, 0)),
                   pl.BlockSpec((heads, tile_a), lambda i: (0, i))),
        compiler_params=pltpu.CompilerParams(dimension_semantics=("parallel",),
                                             vmem_limit_bytes=vmem_small),
    )(x_p, fp["feat_scale"], fp["w_cnn"], fp["w_feat"], fp["b_total"],
      fp["w_ext"], fp["w_asrc"])

    # --- Kernel B: blocked GAT edge softmax + aggregation + BN + ELU (block-sparse skip) ---
    cost = pl.CostEstimate(
        flops=int(2 * hc * n_pad * n_pad + 12 * heads * n_pad * n_pad),
        transcendentals=int(heads * n_pad * n_pad),
        bytes_accessed=int(n_pad * n_pad + nt_d * n_pad * hc * 2 + 6 * n_pad * hc),
    )
    g = pl.pallas_call(
        functools.partial(gat_attention_kernel, heads=heads, ch=hidden,
                          use_bf16_exp=use_bf16_exp),
        out_shape=jax.ShapeDtypeStruct((n_pad, hc), jnp.bfloat16),
        grid_spec=pltpu.PrefetchScalarGridSpec(
            num_scalar_prefetch=1,
            grid=(nt_d, nt_s),
            in_specs=[
                pl.BlockSpec((tile_d, heads), lambda i, j, nnz: (i, 0)),   # a_dst (dst rows)
                pl.BlockSpec((heads, tile_s), lambda i, j, nnz: (0, j)),   # a_src^T (src cols)
                pl.BlockSpec((tile_s, hc), lambda i, j, nnz: (j, 0)),      # xp (src rows, bf16)
                pl.BlockSpec((tile_d, tile_s), lambda i, j, nnz: (i, j)),  # adj mask (int8)
                pl.BlockSpec((1, hc), lambda i, j, nnz: (0, 0)),           # gat bias
                pl.BlockSpec((1, hc), lambda i, j, nnz: (0, 0)),           # bn scale
                pl.BlockSpec((1, hc), lambda i, j, nnz: (0, 0)),           # bn shift
            ],
            out_specs=pl.BlockSpec((tile_d, hc), lambda i, j, nnz: (i, 0)),
            scratch_shapes=[pltpu.VMEM((tile_d, heads), jnp.float32),      # running max m
                            pltpu.VMEM((tile_d, heads), jnp.float32),      # running sum l
                            pltpu.VMEM((tile_d, hc), jnp.float32)]),       # acc
        compiler_params=pltpu.CompilerParams(
            dimension_semantics=("parallel", "arbitrary"),
            vmem_limit_bytes=vmem_b),
        cost_estimate=cost,
    )(blk_nnz, a_dst, a_srcT, xp, adj, fp["gat_bias"], fp["bn1_s"], fp["bn1_b"])

    # --- Kernel C: global_mean_pool (node-tiled accumulation) + MLP head ---
    logits = pl.pallas_call(
        pool_mlp_kernel,
        out_shape=jax.ShapeDtypeStruct((ng_pad, out_channels), jnp.float32),
        grid=(nt_s,),
        in_specs=[
            pl.BlockSpec((ng_pad, tile_s), lambda k: (0, k)),
            pl.BlockSpec((tile_s, hc), lambda k: (k, 0)),
            pl.BlockSpec((hc, hidden), lambda k: (0, 0)),
            pl.BlockSpec((1, hidden), lambda k: (0, 0)),
            pl.BlockSpec((hidden, out_channels), lambda k: (0, 0)),
            pl.BlockSpec((1, out_channels), lambda k: (0, 0)),
        ],
        out_specs=pl.BlockSpec((ng_pad, out_channels), lambda k: (0, 0)),
        scratch_shapes=[pltpu.VMEM((ng_pad, hc), jnp.float32)],
        compiler_params=pltpu.CompilerParams(dimension_semantics=("arbitrary",),
                                             vmem_limit_bytes=vmem_small),
    )(pool, g, fp["wm1"], fp["bm1"], fp["wm2"], fp["bm2"])
    return logits[:num_graphs]


if __name__ == "__main__":
    # Small deterministic example: 2 graphs of 4 nodes each (ring topology),
    # in_channels = 512 (CNN) + 32 (handcrafted + asymmetry) = 544.
    N, F_EXTRA = 8, 32
    IN_CH = CNN_DIM + F_EXTRA
    HIDDEN, HEADS, OUT = 32, 4, 3
    NUM_GRAPHS = 2

    key = jax.random.PRNGKey(0)
    kx, kp = jax.random.split(key)
    x = jax.random.normal(kx, (N, IN_CH), jnp.float32)
    edge_index = jnp.array(
        [[0, 1, 1, 2, 2, 3, 3, 0, 4, 5, 5, 6, 6, 7, 7, 4],   # src
         [1, 0, 2, 1, 3, 2, 0, 3, 5, 4, 6, 5, 7, 6, 4, 7]],  # dst
        dtype=jnp.int32)
    batch = jnp.array([0, 0, 0, 0, 1, 1, 1, 1], dtype=jnp.int32)

    params = init_params(kp, IN_CH, HIDDEN, HEADS, OUT)

    fwd = jax.jit(functools.partial(gat_classifier_forward, hidden=HIDDEN, heads=HEADS,
                                    out_channels=OUT, num_graphs=NUM_GRAPHS))
    out = jax.block_until_ready(fwd(params, x, edge_index, batch))
    assert out.shape == (NUM_GRAPHS, OUT) and bool(jnp.all(jnp.isfinite(out)))
    print("KERNEL_OK")
</pallas_src>

<mosaic_0001>
module attributes {stable_mosaic.version = 11 : i64} {
  func.func @feat_proj_kernel(%arg0: i32, %arg1: memref<32x544xf32, #tpu.memory_space<vmem>>, %arg2: memref<1x32xf32, #tpu.memory_space<vmem>>, %arg3: memref<512x32xf32, #tpu.memory_space<vmem>>, %arg4: memref<32x32xf32, #tpu.memory_space<vmem>>, %arg5: memref<1x32xf32, #tpu.memory_space<vmem>>, %arg6: memref<32x132xf32, #tpu.memory_space<vmem>>, %arg7: memref<4x32xf32, #tpu.memory_space<vmem>>, %arg8: memref<32x128xbf16, #tpu.memory_space<vmem>>, %arg9: memref<32x4xf32, #tpu.memory_space<vmem>>, %arg10: memref<4x32xf32, #tpu.memory_space<vmem>>) attributes {dimension_semantics = [#tpu.dimension_semantics<parallel>], iteration_bounds = array<i64: 1>, scalar_prefetch = 0 : i64, scratch_operands = 0 : i64, tpu.core_type = #tpu.core_type<tc>, window_params = [{transform_indices = @transform_0, window_bounds = array<i64: 32, 544>}, {pipeline_mode = #tpu.pipeline_mode<synchronous>, transform_indices = @transform_1, window_bounds = array<i64: 1, 32>}, {pipeline_mode = #tpu.pipeline_mode<synchronous>, transform_indices = @transform_2, window_bounds = array<i64: 512, 32>}, {pipeline_mode = #tpu.pipeline_mode<synchronous>, transform_indices = @transform_3, window_bounds = array<i64: 32, 32>}, {pipeline_mode = #tpu.pipeline_mode<synchronous>, transform_indices = @transform_4, window_bounds = array<i64: 1, 32>}, {pipeline_mode = #tpu.pipeline_mode<synchronous>, transform_indices = @transform_5, window_bounds = array<i64: 32, 132>}, {pipeline_mode = #tpu.pipeline_mode<synchronous>, transform_indices = @transform_6, window_bounds = array<i64: 4, 32>}, {transform_indices = @transform_7, window_bounds = array<i64: 32, 128>}, {transform_indices = @transform_8, window_bounds = array<i64: 32, 4>}, {transform_indices = @transform_9, window_bounds = array<i64: 4, 32>}]} {
    %c0 = arith.constant 0 : index
    %c0_0 = arith.constant 0 : index
    %0 = vector.load %arg1[%c0, %c0_0] : memref<32x544xf32, #tpu.memory_space<vmem>>, vector<32x544xf32>
    %1 = vector.extract_strided_slice %0 {offsets = [0, 0], sizes = [32, 512], strides = [1, 1]} : vector<32x544xf32> to vector<32x512xf32>
    %2 = vector.extract_strided_slice %0 {offsets = [0, 512], sizes = [32, 32], strides = [1, 1]} : vector<32x544xf32> to vector<32x32xf32>
    %cst = arith.constant dense<0.000000e+00> : vector<32xf32>
    %3 = vector.multi_reduction <add>, %2, %cst [1] : vector<32x32xf32> to vector<32xf32>
    %4 = vector.shape_cast %3 : vector<32xf32> to vector<32x1xf32>
    %cst_1 = arith.constant 3.200000e+01 : f32
    %5 = vector.broadcast %cst_1 : f32 to vector<32x1xf32>
    %6 = arith.divf %4, %5 : vector<32x1xf32>
    %7 = vector.broadcast %6 : vector<32x1xf32> to vector<32x32xf32>
    %8 = arith.subf %2, %7 : vector<32x32xf32>
    %9 = arith.mulf %8, %8 : vector<32x32xf32>
    %cst_2 = arith.constant dense<0.000000e+00> : vector<32xf32>
    %10 = vector.multi_reduction <add>, %9, %cst_2 [1] : vector<32x32xf32> to vector<32xf32>
    %11 = vector.shape_cast %10 : vector<32xf32> to vector<32x1xf32>
    %cst_3 = arith.constant 3.200000e+01 : f32
    %12 = vector.broadcast %cst_3 : f32 to vector<32x1xf32>
    %13 = arith.divf %11, %12 : vector<32x1xf32>
    %14 = vector.broadcast %6 : vector<32x1xf32> to vector<32x32xf32>
    %15 = arith.subf %2, %14 : vector<32x32xf32>
    %cst_4 = arith.constant 9.99999974E-6 : f32
    %16 = vector.broadcast %cst_4 : f32 to vector<32x1xf32>
    %17 = arith.addf %13, %16 : vector<32x1xf32>
    %18 = math.rsqrt %17 : vector<32x1xf32>
    %19 = vector.broadcast %18 : vector<32x1xf32> to vector<32x32xf32>
    %20 = arith.mulf %15, %19 : vector<32x32xf32>
    %c0_5 = arith.constant 0 : index
    %c0_6 = arith.constant 0 : index
    %21 = vector.load %arg3[%c0_5, %c0_6] : memref<512x32xf32, #tpu.memory_space<vmem>>, vector<512x32xf32>
    %cst_7 = arith.constant dense<0.000000e+00> : vector<32x32xf32>
    %22 = tpu.matmul %1, %21, %cst_7 {dimension_numbers = #tpu.dot_dimension_numbers<[1], [0], [0], [1], [0, 0, 1, 1], [], []>} : vector<32x512xf32>, vector<512x32xf32>, vector<32x32xf32> -> vector<32x32xf32>
    %c0_8 = arith.constant 0 : index
    %c0_9 = arith.constant 0 : index
    %23 = vector.load %arg2[%c0_8, %c0_9] : memref<1x32xf32, #tpu.memory_space<vmem>>, vector<1x32xf32>
    %24 = vector.broadcast %23 : vector<1x32xf32> to vector<32x32xf32>
    %25 = arith.mulf %20, %24 : vector<32x32xf32>
    %c0_10 = arith.constant 0 : index
    %c0_11 = arith.constant 0 : index
    %26 = vector.load %arg4[%c0_10, %c0_11] : memref<32x32xf32, #tpu.memory_space<vmem>>, vector<32x32xf32>
    %cst_12 = arith.constant dense<0.000000e+00> : vector<32x32xf32>
    %27 = tpu.matmul %25, %26, %cst_12 {dimension_numbers = #tpu.dot_dimension_numbers<[1], [0], [0], [1], [0, 0, 1, 1], [], []>} : vector<32x32xf32>, vector<32x32xf32>, vector<32x32xf32> -> vector<32x32xf32>
    %28 = arith.addf %22, %27 : vector<32x32xf32>
    %c0_13 = arith.constant 0 : index
    %c0_14 = arith.constant 0 : index
    %29 = vector.load %arg5[%c0_13, %c0_14] : memref<1x32xf32, #tpu.memory_space<vmem>>, vector<1x32xf32>
    %30 = vector.broadcast %29 : vector<1x32xf32> to vector<32x32xf32>
    %31 = arith.addf %28, %30 : vector<32x32xf32>
    %cst_15 = arith.constant 0.000000e+00 : f32
    %32 = vector.broadcast %cst_15 : f32 to vector<32x32xf32>
    %33 = arith.maximumf %31, %32 : vector<32x32xf32>
    %c0_16 = arith.constant 0 : index
    %c0_17 = arith.constant 0 : index
    %34 = vector.load %arg6[%c0_16, %c0_17] : memref<32x132xf32, #tpu.memory_space<vmem>>, vector<32x132xf32>
    %cst_18 = arith.constant dense<0.000000e+00> : vector<32x132xf32>
    %35 = tpu.matmul %33, %34, %cst_18 {dimension_numbers = #tpu.dot_dimension_numbers<[1], [0], [0], [1], [0, 0, 1, 1], [], []>} : vector<32x32xf32>, vector<32x132xf32>, vector<32x132xf32> -> vector<32x132xf32>
    %36 = vector.extract_strided_slice %35 {offsets = [0, 0], sizes = [32, 128], strides = [1, 1]} : vector<32x132xf32> to vector<32x128xf32>
    %37 = arith.truncf %36 : vector<32x128xf32> to vector<32x128xbf16>
    %c0_19 = arith.constant 0 : index
    %c0_20 = arith.constant 0 : index
    %38 = vector.load %arg8[%c0_19, %c0_20] : memref<32x128xbf16, #tpu.memory_space<vmem>>, vector<32x128xbf16>
    tpu.vector_store %arg8[%c0_19, %c0_20], %37 {strides = array<i32>} : memref<32x128xbf16, #tpu.memory_space<vmem>>, vector<32x128xbf16>,
    %39 = vector.extract_strided_slice %35 {offsets = [0, 128], sizes = [32, 4], strides = [1, 1]} : vector<32x132xf32> to vector<32x4xf32>
    %c0_21 = arith.constant 0 : index
    %c0_22 = arith.constant 0 : index
    %40 = vector.load %arg9[%c0_21, %c0_22] : memref<32x4xf32, #tpu.memory_space<vmem>>, vector<32x4xf32>
    tpu.vector_store %arg9[%c0_21, %c0_22], %39 {strides = array<i32>} : memref<32x4xf32, #tpu.memory_space<vmem>>, vector<32x4xf32>,
    %c0_23 = arith.constant 0 : index
    %c0_24 = arith.constant 0 : index
    %41 = vector.load %arg7[%c0_23, %c0_24] : memref<4x32xf32, #tpu.memory_space<vmem>>, vector<4x32xf32>
    "tpu.trace_start"() <{level = 10 : i32, message = "hk,nk->hn"}> : () -> ()
    %cst_25 = arith.constant dense<0.000000e+00> : vector<4x32xf32>
    %42 = tpu.matmul %41, %33, %cst_25 {dimension_numbers = #tpu.dot_dimension_numbers<[1], [1], [0], [0], [0, 0, 1, 0], [], []>} : vector<4x32xf32>, vector<32x32xf32>, vector<4x32xf32> -> vector<4x32xf32>
    "tpu.trace_stop"() : () -> ()
    %c0_26 = arith.constant 0 : index
    %c0_27 = arith.constant 0 : index
    %43 = vector.load %arg10[%c0_26, %c0_27] : memref<4x32xf32, #tpu.memory_space<vmem>>, vector<4x32xf32>
    tpu.vector_store %arg10[%c0_26, %c0_27], %42 {strides = array<i32>} : memref<4x32xf32, #tpu.memory_space<vmem>>, vector<4x32xf32>,
    return
  }
  func.func @transform_0(%arg0: i32) -> (i32, i32) {
    %c0_i32 = arith.constant 0 : i32
    %c0_i32_0 = arith.constant 0 : i32
    return %arg0, %c0_i32 : i32, i32
  }
  func.func @transform_1(%arg0: i32) -> (i32, i32) {
    %c0_i32 = arith.constant 0 : i32
    %c0_i32_0 = arith.constant 0 : i32
    %c0_i32_1 = arith.constant 0 : i32
    return %c0_i32, %c0_i32_0 : i32, i32
  }
  func.func @transform_2(%arg0: i32) -> (i32, i32) {
    %c0_i32 = arith.constant 0 : i32
    %c0_i32_0 = arith.constant 0 : i32
    %c0_i32_1 = arith.constant 0 : i32
    return %c0_i32, %c0_i32_0 : i32, i32
  }
  func.func @transform_3(%arg0: i32) -> (i32, i32) {
    %c0_i32 = arith.constant 0 : i32
    %c0_i32_0 = arith.constant 0 : i32
    %c0_i32_1 = arith.constant 0 : i32
    return %c0_i32, %c0_i32_0 : i32, i32
  }
  func.func @transform_4(%arg0: i32) -> (i32, i32) {
    %c0_i32 = arith.constant 0 : i32
    %c0_i32_0 = arith.constant 0 : i32
    %c0_i32_1 = arith.constant 0 : i32
    return %c0_i32, %c0_i32_0 : i32, i32
  }
  func.func @transform_5(%arg0: i32) -> (i32, i32) {
    %c0_i32 = arith.constant 0 : i32
    %c0_i32_0 = arith.constant 0 : i32
    %c0_i32_1 = arith.constant 0 : i32
    return %c0_i32, %c0_i32_0 : i32, i32
  }
  func.func @transform_6(%arg0: i32) -> (i32, i32) {
    %c0_i32 = arith.constant 0 : i32
    %c0_i32_0 = arith.constant 0 : i32
    %c0_i32_1 = arith.constant 0 : i32
    return %c0_i32, %c0_i32_0 : i32, i32
  }
  func.func @transform_7(%arg0: i32) -> (i32, i32) {
    %c0_i32 = arith.constant 0 : i32
    %c0_i32_0 = arith.constant 0 : i32
    return %arg0, %c0_i32 : i32, i32
  }
  func.func @transform_8(%arg0: i32) -> (i32, i32) {
    %c0_i32 = arith.constant 0 : i32
    %c0_i32_0 = arith.constant 0 : i32
    return %arg0, %c0_i32 : i32, i32
  }
  func.func @transform_9(%arg0: i32) -> (i32, i32) {
    %c0_i32 = arith.constant 0 : i32
    %c0_i32_0 = arith.constant 0 : i32
    return %c0_i32, %arg0 : i32, i32
  }
}

module attributes {stable_mosaic.version = 11 : i64} {
  func.func @gat_attention_kernel(%arg0: i32, %arg1: i32, %arg2: memref<1x1xi32, #tpu.memory_space<smem>>, %arg3: memref<32x4xf32, #tpu.memory_space<vmem>>, %arg4: memref<4x32xf32, #tpu.memory_space<vmem>>, %arg5: memref<32x128xbf16, #tpu.memory_space<vmem>>, %arg6: memref<32x32xi8, #tpu.memory_space<vmem>>, %arg7: memref<1x128xf32, #tpu.memory_space<vmem>>, %arg8: memref<1x128xf32, #tpu.memory_space<vmem>>, %arg9: memref<1x128xf32, #tpu.memory_space<vmem>>, %arg10: memref<32x128xbf16, #tpu.memory_space<vmem>>, %arg11: memref<32x4xf32, #tpu.memory_space<vmem>>, %arg12: memref<32x4xf32, #tpu.memory_space<vmem>>, %arg13: memref<32x128xf32, #tpu.memory_space<vmem>>) attributes {dimension_semantics = [#tpu.dimension_semantics<parallel>, #tpu.dimension_semantics<arbitrary>], iteration_bounds = array<i64: 1, 1>, scalar_prefetch = 1 : i64, scratch_operands = 3 : i64, tpu.core_type = #tpu.core_type<tc>, window_params = [{transform_indices = @transform_0, window_bounds = array<i64: 32, 4>}, {transform_indices = @transform_1, window_bounds = array<i64: 4, 32>}, {transform_indices = @transform_2, window_bounds = array<i64: 32, 128>}, {transform_indices = @transform_3, window_bounds = array<i64: 32, 32>}, {pipeline_mode = #tpu.pipeline_mode<synchronous>, transform_indices = @transform_4, window_bounds = array<i64: 1, 128>}, {pipeline_mode = #tpu.pipeline_mode<synchronous>, transform_indices = @transform_5, window_bounds = array<i64: 1, 128>}, {pipeline_mode = #tpu.pipeline_mode<synchronous>, transform_indices = @transform_6, window_bounds = array<i64: 1, 128>}, {transform_indices = @transform_7, window_bounds = array<i64: 32, 128>}]} {
    %c0_i32 = arith.constant 0 : i32
    %0 = arith.cmpi eq, %arg1, %c0_i32 : i32
    %1 = arith.extui %0 : i1 to i32
    %c0_i32_0 = arith.constant 0 : i32
    %2 = arith.cmpi ne, %1, %c0_i32_0 : i32
    scf.if %2 {
      %cst = arith.constant -1.000000e+30 : f32
      %12 = vector.broadcast %cst : f32 to vector<32x4xf32>
      %c0 = arith.constant 0 : index
      %c0_5 = arith.constant 0 : index
      %13 = vector.load %arg11[%c0, %c0_5] : memref<32x4xf32, #tpu.memory_space<vmem>>, vector<32x4xf32>
      tpu.vector_store %arg11[%c0, %c0_5], %12 {strides = array<i32>} : memref<32x4xf32, #tpu.memory_space<vmem>>, vector<32x4xf32>,
      %cst_6 = arith.constant 0.000000e+00 : f32
      %14 = vector.broadcast %cst_6 : f32 to vector<32x4xf32>
      %c0_7 = arith.constant 0 : index
      %c0_8 = arith.constant 0 : index
      %15 = vector.load %arg12[%c0_7, %c0_8] : memref<32x4xf32, #tpu.memory_space<vmem>>, vector<32x4xf32>
      tpu.vector_store %arg12[%c0_7, %c0_8], %14 {strides = array<i32>} : memref<32x4xf32, #tpu.memory_space<vmem>>, vector<32x4xf32>,
      %cst_9 = arith.constant 0.000000e+00 : f32
      %16 = vector.broadcast %cst_9 : f32 to vector<32x128xf32>
      %c0_10 = arith.constant 0 : index
      %c0_11 = arith.constant 0 : index
      %17 = vector.load %arg13[%c0_10, %c0_11] : memref<32x128xf32, #tpu.memory_space<vmem>>, vector<32x128xf32>
      tpu.vector_store %arg13[%c0_10, %c0_11], %16 {strides = array<i32>} : memref<32x128xf32, #tpu.memory_space<vmem>>, vector<32x128xf32>,
    } else {
    }
    %3 = arith.index_cast %arg0 : i32 to index
    %4 = arith.index_cast %arg1 : i32 to index
    %5 = memref.load %arg2[%3, %4] : memref<1x1xi32, #tpu.memory_space<smem>>
    %c0_i32_1 = arith.constant 0 : i32
    %6 = arith.cmpi sgt, %5, %c0_i32_1 : i32
    %7 = arith.extui %6 : i1 to i32
    %c0_i32_2 = arith.constant 0 : i32
    %8 = arith.cmpi ne, %7, %c0_i32_2 : i32
    scf.if %8 {
      %c0 = arith.constant 0 : index
      %c0_5 = arith.constant 0 : index
      %12 = vector.load %arg6[%c0, %c0_5] : memref<32x32xi8, #tpu.memory_space<vmem>>, vector<32x32xi8>
      %13 = arith.sitofp %12 : vector<32x32xi8> to vector<32x32xf32>
      %cst = arith.constant 0.000000e+00 : f32
      %14 = vector.broadcast %cst : f32 to vector<32x32xf32>
      %15 = arith.cmpf ogt, %13, %14 : vector<32x32xf32>
      %16 = arith.truncf %13 : vector<32x32xf32> to vector<32x32xbf16>
      %c0_6 = arith.constant 0 : index
      %c0_7 = arith.constant 0 : index
      %17 = vector.load %arg3[%c0_6, %c0_7] : memref<32x4xf32, #tpu.memory_space<vmem>>, vector<32x4xf32>
      %c0_8 = arith.constant 0 : index
      %c0_9 = arith.constant 0 : index
      %18 = vector.load %arg4[%c0_8, %c0_9] : memref<4x32xf32, #tpu.memory_space<vmem>>, vector<4x32xf32>
      %c0_10 = arith.constant 0 : index
      %c0_11 = arith.constant 0 : index
      %19 = vector.load %arg5[%c0_10, %c0_11] : memref<32x128xbf16, #tpu.memory_space<vmem>>, vector<32x128xbf16>
      %c0_12 = arith.constant 0 : index
      %c0_13 = arith.constant 0 : index
      %20 = vector.load %arg11[%c0_12, %c0_13] : memref<32x4xf32, #tpu.memory_space<vmem>>, vector<32x4xf32>
      %c0_14 = arith.constant 0 : index
      %c0_15 = arith.constant 0 : index
      %21 = vector.load %arg12[%c0_14, %c0_15] : memref<32x4xf32, #tpu.memory_space<vmem>>, vector<32x4xf32>
      %22 = vector.extract_strided_slice %17 {offsets = [0, 0], sizes = [32, 1], strides = [1, 1]} : vector<32x4xf32> to vector<32x1xf32>
      %23 = vector.extract_strided_slice %18 {offsets = [0, 0], sizes = [1, 32], strides = [1, 1]} : vector<4x32xf32> to vector<1x32xf32>
      %24 = vector.broadcast %22 : vector<32x1xf32> to vector<32x32xf32>
      %25 = vector.broadcast %23 : vector<1x32xf32> to vector<32x32xf32>
      %26 = arith.addf %24, %25 : vector<32x32xf32>
      %cst_16 = arith.constant 0.000000e+00 : f32
      %27 = vector.broadcast %cst_16 : f32 to vector<32x32xf32>
      %28 = arith.cmpf ogt, %26, %27 : vector<32x32xf32>
      %cst_17 = arith.constant 2.000000e-01 : f32
      %29 = vector.broadcast %cst_17 : f32 to vector<32x32xf32>
      %30 = arith.mulf %29, %26 : vector<32x32xf32>
      %31 = arith.select %28, %26, %30 : vector<32x32xi1>, vector<32x32xf32>
      %cst_18 = arith.constant -1.000000e+30 : f32
      %32 = vector.broadcast %cst_18 : f32 to vector<32x32xf32>
      %33 = arith.select %15, %31, %32 : vector<32x32xi1>, vector<32x32xf32>
      %34 = vector.extract_strided_slice %20 {offsets = [0, 0], sizes = [32, 1], strides = [1, 1]} : vector<32x4xf32> to vector<32x1xf32>
      %cst_19 = arith.constant dense<0xFF800000> : vector<32xf32>
      %35 = vector.multi_reduction <maximumf>, %33, %cst_19 [1] : vector<32x32xf32> to vector<32xf32>
      %36 = vector.shape_cast %35 : vector<32xf32> to vector<32x1xf32>
      %37 = arith.maximumf %34, %36 : vector<32x1xf32>
      %38 = arith.subf %34, %37 : vector<32x1xf32>
      %39 = math.exp %38 : vector<32x1xf32>
      %40 = vector.broadcast %37 : vector<32x1xf32> to vector<32x32xf32>
      %41 = arith.subf %33, %40 : vector<32x32xf32>
      %42 = arith.truncf %41 : vector<32x32xf32> to vector<32x32xbf16>
      %43 = math.exp %42 : vector<32x32xbf16>
      %44 = arith.mulf %43, %16 : vector<32x32xbf16>
      %45 = arith.extf %44 : vector<32x32xbf16> to vector<32x32xf32>
      %cst_20 = arith.constant dense<0.000000e+00> : vector<32xf32>
      %46 = vector.multi_reduction <add>, %45, %cst_20 [1] : vector<32x32xf32> to vector<32xf32>
      %47 = vector.shape_cast %46 : vector<32xf32> to vector<32x1xf32>
      %48 = vector.extract_strided_slice %21 {offsets = [0, 0], sizes = [32, 1], strides = [1, 1]} : vector<32x4xf32> to vector<32x1xf32>
      %49 = arith.mulf %39, %48 : vector<32x1xf32>
      %50 = arith.addf %49, %47 : vector<32x1xf32>
      %51 = vector.extract_strided_slice %19 {offsets = [0, 0], sizes = [32, 32], strides = [1, 1]} : vector<32x128xbf16> to vector<32x32xbf16>
      %cst_21 = arith.constant dense<0.000000e+00> : vector<32x32xf32>
      %52 = tpu.matmul %44, %51, %cst_21 {dimension_numbers = #tpu.dot_dimension_numbers<[1], [0], [0], [1], [0, 0, 1, 1], [], []>} : vector<32x32xbf16>, vector<32x32xbf16>, vector<32x32xf32> -> vector<32x32xf32>
      %53 = vector.extract_strided_slice %17 {offsets = [0, 1], sizes = [32, 1], strides = [1, 1]} : vector<32x4xf32> to vector<32x1xf32>
      %54 = vector.extract_strided_slice %18 {offsets = [1, 0], sizes = [1, 32], strides = [1, 1]} : vector<4x32xf32> to vector<1x32xf32>
      %55 = vector.broadcast %53 : vector<32x1xf32> to vector<32x32xf32>
      %56 = vector.broadcast %54 : vector<1x32xf32> to vector<32x32xf32>
      %57 = arith.addf %55, %56 : vector<32x32xf32>
      %cst_22 = arith.constant 0.000000e+00 : f32
      %58 = vector.broadcast %cst_22 : f32 to vector<32x32xf32>
      %59 = arith.cmpf ogt, %57, %58 : vector<32x32xf32>
      %cst_23 = arith.constant 2.000000e-01 : f32
      %60 = vector.broadcast %cst_23 : f32 to vector<32x32xf32>
      %61 = arith.mulf %60, %57 : vector<32x32xf32>
      %62 = arith.select %59, %57, %61 : vector<32x32xi1>, vector<32x32xf32>
      %cst_24 = arith.constant -1.000000e+30 : f32
      %63 = vector.broadcast %cst_24 : f32 to vector<32x32xf32>
      %64 = arith.select %15, %62, %63 : vector<32x32xi1>, vector<32x32xf32>
      %65 = vector.extract_strided_slice %20 {offsets = [0, 1], sizes = [32, 1], strides = [1, 1]} : vector<32x4xf32> to vector<32x1xf32>
      %cst_25 = arith.constant dense<0xFF800000> : vector<32xf32>
      %66 = vector.multi_reduction <maximumf>, %64, %cst_25 [1] : vector<32x32xf32> to vector<32xf32>
      %67 = vector.shape_cast %66 : vector<32xf32> to vector<32x1xf32>
      %68 = arith.maximumf %65, %67 : vector<32x1xf32>
      %69 = arith.subf %65, %68 : vector<32x1xf32>
      %70 = math.exp %69 : vector<32x1xf32>
      %71 = vector.broadcast %68 : vector<32x1xf32> to vector<32x32xf32>
      %72 = arith.subf %64, %71 : vector<32x32xf32>
      %73 = arith.truncf %72 : vector<32x32xf32> to vector<32x32xbf16>
      %74 = math.exp %73 : vector<32x32xbf16>
      %75 = arith.mulf %74, %16 : vector<32x32xbf16>
      %76 = arith.extf %75 : vector<32x32xbf16> to vector<32x32xf32>
      %cst_26 = arith.constant dense<0.000000e+00> : vector<32xf32>
      %77 = vector.multi_reduction <add>, %76, %cst_26 [1] : vector<32x32xf32> to vector<32xf32>
      %78 = vector.shape_cast %77 : vector<32xf32> to vector<32x1xf32>
      %79 = vector.extract_strided_slice %21 {offsets = [0, 1], sizes = [32, 1], strides = [1, 1]} : vector<32x4xf32> to vector<32x1xf32>
      %80 = arith.mulf %70, %79 : vector<32x1xf32>
      %81 = arith.addf %80, %78 : vector<32x1xf32>
      %82 = vector.extract_strided_slice %19 {offsets = [0, 32], sizes = [32, 32], strides = [1, 1]} : vector<32x128xbf16> to vector<32x32xbf16>
      %cst_27 = arith.constant dense<0.000000e+00> : vector<32x32xf32>
      %83 = tpu.matmul %75, %82, %cst_27 {dimension_numbers = #tpu.dot_dimension_numbers<[1], [0], [0], [1], [0, 0, 1, 1], [], []>} : vector<32x32xbf16>, vector<32x32xbf16>, vector<32x32xf32> -> vector<32x32xf32>
      %84 = vector.extract_strided_slice %17 {offsets = [0, 2], sizes = [32, 1], strides = [1, 1]} : vector<32x4xf32> to vector<32x1xf32>
      %85 = vector.extract_strided_slice %18 {offsets = [2, 0], sizes = [1, 32], strides = [1, 1]} : vector<4x32xf32> to vector<1x32xf32>
      %86 = vector.broadcast %84 : vector<32x1xf32> to vector<32x32xf32>
      %87 = vector.broadcast %85 : vector<1x32xf32> to vector<32x32xf32>
      %88 = arith.addf %86, %87 : vector<32x32xf32>
      %cst_28 = arith.constant 0.000000e+00 : f32
      %89 = vector.broadcast %cst_28 : f32 to vector<32x32xf32>
      %90 = arith.cmpf ogt, %88, %89 : vector<32x32xf32>
      %cst_29 = arith.constant 2.000000e-01 : f32
      %91 = vector.broadcast %cst_29 : f32 to vector<32x32xf32>
      %92 = arith.mulf %91, %88 : vector<32x32xf32>
      %93 = arith.select %90, %88, %92 : vector<32x32xi1>, vector<32x32xf32>
      %cst_30 = arith.constant -1.000000e+30 : f32
      %94 = vector.broadcast %cst_30 : f32 to vector<32x32xf32>
      %95 = arith.select %15, %93, %94 : vector<32x32xi1>, vector<32x32xf32>
      %96 = vector.extract_strided_slice %20 {offsets = [0, 2], sizes = [32, 1], strides = [1, 1]} : vector<32x4xf32> to vector<32x1xf32>
      %cst_31 = arith.constant dense<0xFF800000> : vector<32xf32>
      %97 = vector.multi_reduction <maximumf>, %95, %cst_31 [1] : vector<32x32xf32> to vector<32xf32>
      %98 = vector.shape_cast %97 : vector<32xf32> to vector<32x1xf32>
      %99 = arith.maximumf %96, %98 : vector<32x1xf32>
      %100 = arith.subf %96, %99 : vector<32x1xf32>
      %101 = math.exp %100 : vector<32x1xf32>
      %102 = vector.broadcast %99 : vector<32x1xf32> to vector<32x32xf32>
      %103 = arith.subf %95, %102 : vector<32x32xf32>
      %104 = arith.truncf %103 : vector<32x32xf32> to vector<32x32xbf16>
      %105 = math.exp %104 : vector<32x32xbf16>
      %106 = arith.mulf %105, %16 : vector<32x32xbf16>
      %107 = arith.extf %106 : vector<32x32xbf16> to vector<32x32xf32>
      %cst_32 = arith.constant dense<0.000000e+00> : vector<32xf32>
      %108 = vector.multi_reduction <add>, %107, %cst_32 [1] : vector<32x32xf32> to vector<32xf32>
      %109 = vector.shape_cast %108 : vector<32xf32> to vector<32x1xf32>
      %110 = vector.extract_strided_slice %21 {offsets = [0, 2], sizes = [32, 1], strides = [1, 1]} : vector<32x4xf32> to vector<32x1xf32>
      %111 = arith.mulf %101, %110 : vector<32x1xf32>
      %112 = arith.addf %111, %109 : vector<32x1xf32>
      %113 = vector.extract_strided_slice %19 {offsets = [0, 64], sizes = [32, 32], strides = [1, 1]} : vector<32x128xbf16> to vector<32x32xbf16>
      %cst_33 = arith.constant dense<0.000000e+00> : vector<32x32xf32>
      %114 = tpu.matmul %106, %113, %cst_33 {dimension_numbers = #tpu.dot_dimension_numbers<[1], [0], [0], [1], [0, 0, 1, 1], [], []>} : vector<32x32xbf16>, vector<32x32xbf16>, vector<32x32xf32> -> vector<32x32xf32>
      %115 = vector.extract_strided_slice %17 {offsets = [0, 3], sizes = [32, 1], strides = [1, 1]} : vector<32x4xf32> to vector<32x1xf32>
      %116 = vector.extract_strided_slice %18 {offsets = [3, 0], sizes = [1, 32], strides = [1, 1]} : vector<4x32xf32> to vector<1x32xf32>
      %117 = vector.broadcast %115 : vector<32x1xf32> to vector<32x32xf32>
      %118 = vector.broadcast %116 : vector<1x32xf32> to vector<32x32xf32>
      %119 = arith.addf %117, %118 : vector<32x32xf32>
      %cst_34 = arith.constant 0.000000e+00 : f32
      %120 = vector.broadcast %cst_34 : f32 to vector<32x32xf32>
      %121 = arith.cmpf ogt, %119, %120 : vector<32x32xf32>
      %cst_35 = arith.constant 2.000000e-01 : f32
      %122 = vector.broadcast %cst_35 : f32 to vector<32x32xf32>
      %123 = arith.mulf %122, %119 : vector<32x32xf32>
      %124 = arith.select %121, %119, %123 : vector<32x32xi1>, vector<32x32xf32>
      %cst_36 = arith.constant -1.000000e+30 : f32
      %125 = vector.broadcast %cst_36 : f32 to vector<32x32xf32>
      %126 = arith.select %15, %124, %125 : vector<32x32xi1>, vector<32x32xf32>
      %127 = vector.extract_strided_slice %20 {offsets = [0, 3], sizes = [32, 1], strides = [1, 1]} : vector<32x4xf32> to vector<32x1xf32>
      %cst_37 = arith.constant dense<0xFF800000> : vector<32xf32>
      %128 = vector.multi_reduction <maximumf>, %126, %cst_37 [1] : vector<32x32xf32> to vector<32xf32>
      %129 = vector.shape_cast %128 : vector<32xf32> to vector<32x1xf32>
      %130 = arith.maximumf %127, %129 : vector<32x1xf32>
      %131 = arith.subf %127, %130 : vector<32x1xf32>
      %132 = math.exp %131 : vector<32x1xf32>
      %133 = vector.broadcast %130 : vector<32x1xf32> to vector<32x32xf32>
      %134 = arith.subf %126, %133 : vector<32x32xf32>
      %135 = arith.truncf %134 : vector<32x32xf32> to vector<32x32xbf16>
      %136 = math.exp %135 : vector<32x32xbf16>
      %137 = arith.mulf %136, %16 : vector<32x32xbf16>
      %138 = arith.extf %137 : vector<32x32xbf16> to vector<32x32xf32>
      %cst_38 = arith.constant dense<0.000000e+00> : vector<32xf32>
      %139 = vector.multi_reduction <add>, %138, %cst_38 [1] : vector<32x32xf32> to vector<32xf32>
      %140 = vector.shape_cast %139 : vector<32xf32> to vector<32x1xf32>
      %141 = vector.extract_strided_slice %21 {offsets = [0, 3], sizes = [32, 1], strides = [1, 1]} : vector<32x4xf32> to vector<32x1xf32>
      %142 = arith.mulf %132, %141 : vector<32x1xf32>
      %143 = arith.addf %142, %140 : vector<32x1xf32>
      %144 = vector.extract_strided_slice %19 {offsets = [0, 96], sizes = [32, 32], strides = [1, 1]} : vector<32x128xbf16> to vector<32x32xbf16>
      %cst_39 = arith.constant dense<0.000000e+00> : vector<32x32xf32>
      %145 = tpu.matmul %137, %144, %cst_39 {dimension_numbers = #tpu.dot_dimension_numbers<[1], [0], [0], [1], [0, 0, 1, 1], [], []>} : vector<32x32xbf16>, vector<32x32xbf16>, vector<32x32xf32> -> vector<32x32xf32>
      %146 = tpu.concatenate %37, %68, %99, %130 in 1 : vector<32x1xf32>, vector<32x1xf32>, vector<32x1xf32>, vector<32x1xf32> -> vector<32x4xf32>
      %c0_40 = arith.constant 0 : index
      %c0_41 = arith.constant 0 : index
      %147 = vector.load %arg11[%c0_40, %c0_41] : memref<32x4xf32, #tpu.memory_space<vmem>>, vector<32x4xf32>
      tpu.vector_store %arg11[%c0_40, %c0_41], %146 {strides = array<i32>} : memref<32x4xf32, #tpu.memory_space<vmem>>, vector<32x4xf32>,
      %148 = tpu.concatenate %50, %81, %112, %143 in 1 : vector<32x1xf32>, vector<32x1xf32>, vector<32x1xf32>, vector<32x1xf32> -> vector<32x4xf32>
      %c0_42 = arith.constant 0 : index
      %c0_43 = arith.constant 0 : index
      %149 = vector.load %arg12[%c0_42, %c0_43] : memref<32x4xf32, #tpu.memory_space<vmem>>, vector<32x4xf32>
      tpu.vector_store %arg12[%c0_42, %c0_43], %148 {strides = array<i32>} : memref<32x4xf32, #tpu.memory_space<vmem>>, vector<32x4xf32>,
      %150 = vector.shape_cast %39 : vector<32x1xf32> to vector<32x1xf32>
      %151 = vector.broadcast %150 : vector<32x1xf32> to vector<32x32xf32>
      %152 = vector.shape_cast %70 : vector<32x1xf32> to vector<32x1xf32>
      %153 = vector.broadcast %152 : vector<32x1xf32> to vector<32x32xf32>
      %154 = vector.shape_cast %101 : vector<32x1xf32> to vector<32x1xf32>
      %155 = vector.broadcast %154 : vector<32x1xf32> to vector<32x32xf32>
      %156 = vector.shape_cast %132 : vector<32x1xf32> to vector<32x1xf32>
      %157 = vector.broadcast %156 : vector<32x1xf32> to vector<32x32xf32>
      %158 = tpu.concatenate %151, %153, %155, %157 in 1 : vector<32x32xf32>, vector<32x32xf32>, vector<32x32xf32>, vector<32x32xf32> -> vector<32x128xf32>
      %c0_44 = arith.constant 0 : index
      %c0_45 = arith.constant 0 : index
      %159 = vector.load %arg13[%c0_44, %c0_45] : memref<32x128xf32, #tpu.memory_space<vmem>>, vector<32x128xf32>
      %160 = arith.mulf %158, %159 : vector<32x128xf32>
      %161 = tpu.concatenate %52, %83, %114, %145 in 1 : vector<32x32xf32>, vector<32x32xf32>, vector<32x32xf32>, vector<32x32xf32> -> vector<32x128xf32>
      %162 = arith.addf %160, %161 : vector<32x128xf32>
      %c0_46 = arith.constant 0 : index
      %c0_47 = arith.constant 0 : index
      %163 = vector.load %arg13[%c0_46, %c0_47] : memref<32x128xf32, #tpu.memory_space<vmem>>, vector<32x128xf32>
      tpu.vector_store %arg13[%c0_46, %c0_47], %162 {strides = array<i32>} : memref<32x128xf32, #tpu.memory_space<vmem>>, vector<32x128xf32>,
    } else {
    }
    %c0_i32_3 = arith.constant 0 : i32
    %9 = arith.cmpi eq, %arg1, %c0_i32_3 : i32
    %10 = arith.extui %9 : i1 to i32
    %c0_i32_4 = arith.constant 0 : i32
    %11 = arith.cmpi ne, %10, %c0_i32_4 : i32
    scf.if %11 {
      %c0 = arith.constant 0 : index
      %c0_5 = arith.constant 0 : index
      %12 = vector.load %arg12[%c0, %c0_5] : memref<32x4xf32, #tpu.memory_space<vmem>>, vector<32x4xf32>
      %cst = arith.constant 1.000000e-30 : f32
      %13 = vector.broadcast %cst : f32 to vector<32x4xf32>
      %14 = arith.maximumf %12, %13 : vector<32x4xf32>
      %15 = tpu.reciprocal %14 : vector<32x4xf32> -> vector<32x4xf32>
      %16 = vector.extract_strided_slice %15 {offsets = [0, 0], sizes = [32, 1], strides = [1, 1]} : vector<32x4xf32> to vector<32x1xf32>
      %17 = vector.shape_cast %16 : vector<32x1xf32> to vector<32x1xf32>
      %18 = vector.broadcast %17 : vector<32x1xf32> to vector<32x32xf32>
      %19 = vector.extract_strided_slice %15 {offsets = [0, 1], sizes = [32, 1], strides = [1, 1]} : vector<32x4xf32> to vector<32x1xf32>
      %20 = vector.shape_cast %19 : vector<32x1xf32> to vector<32x1xf32>
      %21 = vector.broadcast %20 : vector<32x1xf32> to vector<32x32xf32>
      %22 = vector.extract_strided_slice %15 {offsets = [0, 2], sizes = [32, 1], strides = [1, 1]} : vector<32x4xf32> to vector<32x1xf32>
      %23 = vector.shape_cast %22 : vector<32x1xf32> to vector<32x1xf32>
      %24 = vector.broadcast %23 : vector<32x1xf32> to vector<32x32xf32>
      %25 = vector.extract_strided_slice %15 {offsets = [0, 3], sizes = [32, 1], strides = [1, 1]} : vector<32x4xf32> to vector<32x1xf32>
      %26 = vector.shape_cast %25 : vector<32x1xf32> to vector<32x1xf32>
      %27 = vector.broadcast %26 : vector<32x1xf32> to vector<32x32xf32>
      %28 = tpu.concatenate %18, %21, %24, %27 in 1 : vector<32x32xf32>, vector<32x32xf32>, vector<32x32xf32>, vector<32x32xf32> -> vector<32x128xf32>
      %c0_6 = arith.constant 0 : index
      %c0_7 = arith.constant 0 : index
      %29 = vector.load %arg13[%c0_6, %c0_7] : memref<32x128xf32, #tpu.memory_space<vmem>>, vector<32x128xf32>
      %30 = arith.mulf %29, %28 : vector<32x128xf32>
      %c0_8 = arith.constant 0 : index
      %c0_9 = arith.constant 0 : index
      %31 = vector.load %arg7[%c0_8, %c0_9] : memref<1x128xf32, #tpu.memory_space<vmem>>, vector<1x128xf32>
      %32 = vector.broadcast %31 : vector<1x128xf32> to vector<32x128xf32>
      %33 = arith.addf %30, %32 : vector<32x128xf32>
      %c0_10 = arith.constant 0 : index
      %c0_11 = arith.constant 0 : index
      %34 = vector.load %arg8[%c0_10, %c0_11] : memref<1x128xf32, #tpu.memory_space<vmem>>, vector<1x128xf32>
      %35 = vector.broadcast %34 : vector<1x128xf32> to vector<32x128xf32>
      %36 = arith.mulf %33, %35 : vector<32x128xf32>
      %c0_12 = arith.constant 0 : index
      %c0_13 = arith.constant 0 : index
      %37 = vector.load %arg9[%c0_12, %c0_13] : memref<1x128xf32, #tpu.memory_space<vmem>>, vector<1x128xf32>
      %38 = vector.broadcast %37 : vector<1x128xf32> to vector<32x128xf32>
      %39 = arith.addf %36, %38 : vector<32x128xf32>
      %cst_14 = arith.constant 0.000000e+00 : f32
      %40 = vector.broadcast %cst_14 : f32 to vector<32x128xf32>
      %41 = arith.cmpf ogt, %39, %40 : vector<32x128xf32>
      %cst_15 = arith.constant 0.000000e+00 : f32
      %42 = vector.broadcast %cst_15 : f32 to vector<32x128xf32>
      %43 = arith.minimumf %39, %42 : vector<32x128xf32>
      %44 = math.exp %43 : vector<32x128xf32>
      %cst_16 = arith.constant 1.000000e+00 : f32
      %45 = vector.broadcast %cst_16 : f32 to vector<32x128xf32>
      %46 = arith.subf %44, %45 : vector<32x128xf32>
      %47 = arith.select %41, %39, %46 : vector<32x128xi1>, vector<32x128xf32>
      %48 = arith.truncf %47 : vector<32x128xf32> to vector<32x128xbf16>
      %c0_17 = arith.constant 0 : index
      %c0_18 = arith.constant 0 : index
      %49 = vector.load %arg10[%c0_17, %c0_18] : memref<32x128xbf16, #tpu.memory_space<vmem>>, vector<32x128xbf16>
      tpu.vector_store %arg10[%c0_17, %c0_18], %48 {strides = array<i32>} : memref<32x128xbf16, #tpu.memory_space<vmem>>, vector<32x128xbf16>,
    } else {
    }
    return
  }
  func.func @transform_0(%arg0: i32, %arg1: i32, %arg2: memref<1x1xi32, #tpu.memory_space<smem>>) -> (i32, i32) {
    %c0_i32 = arith.constant 0 : i32
    %c0_i32_0 = arith.constant 0 : i32
    return %arg0, %c0_i32 : i32, i32
  }
  func.func @transform_1(%arg0: i32, %arg1: i32, %arg2: memref<1x1xi32, #tpu.memory_space<smem>>) -> (i32, i32) {
    %c0_i32 = arith.constant 0 : i32
    %c0_i32_0 = arith.constant 0 : i32
    return %c0_i32, %arg1 : i32, i32
  }
  func.func @transform_2(%arg0: i32, %arg1: i32, %arg2: memref<1x1xi32, #tpu.memory_space<smem>>) -> (i32, i32) {
    %c0_i32 = arith.constant 0 : i32
    %c0_i32_0 = arith.constant 0 : i32
    return %arg1, %c0_i32 : i32, i32
  }
  func.func @transform_3(%arg0: i32, %arg1: i32, %arg2: memref<1x1xi32, #tpu.memory_space<smem>>) -> (i32, i32) {
    %c0_i32 = arith.constant 0 : i32
    return %arg0, %arg1 : i32, i32
  }
  func.func @transform_4(%arg0: i32, %arg1: i32, %arg2: memref<1x1xi32, #tpu.memory_space<smem>>) -> (i32, i32) {
    %c0_i32 = arith.constant 0 : i32
    %c0_i32_0 = arith.constant 0 : i32
    %c0_i32_1 = arith.constant 0 : i32
    return %c0_i32, %c0_i32_0 : i32, i32
  }
  func.func @transform_5(%arg0: i32, %arg1: i32, %arg2: memref<1x1xi32, #tpu.memory_space<smem>>) -> (i32, i32) {
    %c0_i32 = arith.constant 0 : i32
    %c0_i32_0 = arith.constant 0 : i32
    %c0_i32_1 = arith.constant 0 : i32
    return %c0_i32, %c0_i32_0 : i32, i32
  }
  func.func @transform_6(%arg0: i32, %arg1: i32, %arg2: memref<1x1xi32, #tpu.memory_space<smem>>) -> (i32, i32) {
    %c0_i32 = arith.constant 0 : i32
    %c0_i32_0 = arith.constant 0 : i32
    %c0_i32_1 = arith.constant 0 : i32
    return %c0_i32, %c0_i32_0 : i32, i32
  }
  func.func @transform_7(%arg0: i32, %arg1: i32, %arg2: memref<1x1xi32, #tpu.memory_space<smem>>) -> (i32, i32) {
    %c0_i32 = arith.constant 0 : i32
    %c0_i32_0 = arith.constant 0 : i32
    return %arg0, %c0_i32 : i32, i32
  }
}

module attributes {stable_mosaic.version = 11 : i64} {
  func.func @pool_mlp_kernel(%arg0: i32, %arg1: memref<8x32xf32, #tpu.memory_space<vmem>>, %arg2: memref<32x128xbf16, #tpu.memory_space<vmem>>, %arg3: memref<128x32xf32, #tpu.memory_space<vmem>>, %arg4: memref<1x32xf32, #tpu.memory_space<vmem>>, %arg5: memref<32x3xf32, #tpu.memory_space<vmem>>, %arg6: memref<1x3xf32, #tpu.memory_space<vmem>>, %arg7: memref<8x3xf32, #tpu.memory_space<vmem>>, %arg8: memref<8x128xf32, #tpu.memory_space<vmem>>) attributes {dimension_semantics = [#tpu.dimension_semantics<arbitrary>], iteration_bounds = array<i64: 1>, scalar_prefetch = 0 : i64, scratch_operands = 1 : i64, tpu.core_type = #tpu.core_type<tc>, window_params = [{transform_indices = @transform_0, window_bounds = array<i64: 8, 32>}, {transform_indices = @transform_1, window_bounds = array<i64: 32, 128>}, {pipeline_mode = #tpu.pipeline_mode<synchronous>, transform_indices = @transform_2, window_bounds = array<i64: 128, 32>}, {pipeline_mode = #tpu.pipeline_mode<synchronous>, transform_indices = @transform_3, window_bounds = array<i64: 1, 32>}, {pipeline_mode = #tpu.pipeline_mode<synchronous>, transform_indices = @transform_4, window_bounds = array<i64: 32, 3>}, {pipeline_mode = #tpu.pipeline_mode<synchronous>, transform_indices = @transform_5, window_bounds = array<i64: 1, 3>}, {pipeline_mode = #tpu.pipeline_mode<synchronous>, transform_indices = @transform_6, window_bounds = array<i64: 8, 3>}]} {
    %c0_i32 = arith.constant 0 : i32
    %0 = arith.cmpi eq, %arg0, %c0_i32 : i32
    %1 = arith.extui %0 : i1 to i32
    %c0_i32_0 = arith.constant 0 : i32
    %2 = arith.cmpi ne, %1, %c0_i32_0 : i32
    scf.if %2 {
      %cst_10 = arith.constant 0.000000e+00 : f32
      %13 = vector.broadcast %cst_10 : f32 to vector<8x128xf32>
      %c0_11 = arith.constant 0 : index
      %c0_12 = arith.constant 0 : index
      %14 = vector.load %arg8[%c0_11, %c0_12] : memref<8x128xf32, #tpu.memory_space<vmem>>, vector<8x128xf32>
      tpu.vector_store %arg8[%c0_11, %c0_12], %13 {strides = array<i32>} : memref<8x128xf32, #tpu.memory_space<vmem>>, vector<8x128xf32>,
    } else {
    }
    %c0 = arith.constant 0 : index
    %c0_1 = arith.constant 0 : index
    %3 = vector.load %arg8[%c0, %c0_1] : memref<8x128xf32, #tpu.memory_space<vmem>>, vector<8x128xf32>
    %c0_2 = arith.constant 0 : index
    %c0_3 = arith.constant 0 : index
    %4 = vector.load %arg1[%c0_2, %c0_3] : memref<8x32xf32, #tpu.memory_space<vmem>>, vector<8x32xf32>
    %c0_4 = arith.constant 0 : index
    %c0_5 = arith.constant 0 : index
    %5 = vector.load %arg2[%c0_4, %c0_5] : memref<32x128xbf16, #tpu.memory_space<vmem>>, vector<32x128xbf16>
    %6 = arith.extf %5 : vector<32x128xbf16> to vector<32x128xf32>
    %cst = arith.constant dense<0.000000e+00> : vector<8x128xf32>
    %7 = tpu.matmul %4, %6, %cst {dimension_numbers = #tpu.dot_dimension_numbers<[1], [0], [0], [1], [0, 0, 1, 1], [], []>} : vector<8x32xf32>, vector<32x128xf32>, vector<8x128xf32> -> vector<8x128xf32>
    %8 = arith.addf %3, %7 : vector<8x128xf32>
    %c0_6 = arith.constant 0 : index
    %c0_7 = arith.constant 0 : index
    %9 = vector.load %arg8[%c0_6, %c0_7] : memref<8x128xf32, #tpu.memory_space<vmem>>, vector<8x128xf32>
    tpu.vector_store %arg8[%c0_6, %c0_7], %8 {strides = array<i32>} : memref<8x128xf32, #tpu.memory_space<vmem>>, vector<8x128xf32>,
    %c0_i32_8 = arith.constant 0 : i32
    %10 = arith.cmpi eq, %arg0, %c0_i32_8 : i32
    %11 = arith.extui %10 : i1 to i32
    %c0_i32_9 = arith.constant 0 : i32
    %12 = arith.cmpi ne, %11, %c0_i32_9 : i32
    scf.if %12 {
      %c0_10 = arith.constant 0 : index
      %c0_11 = arith.constant 0 : index
      %13 = vector.load %arg8[%c0_10, %c0_11] : memref<8x128xf32, #tpu.memory_space<vmem>>, vector<8x128xf32>
      %c0_12 = arith.constant 0 : index
      %c0_13 = arith.constant 0 : index
      %14 = vector.load %arg3[%c0_12, %c0_13] : memref<128x32xf32, #tpu.memory_space<vmem>>, vector<128x32xf32>
      %cst_14 = arith.constant dense<0.000000e+00> : vector<8x32xf32>
      %15 = tpu.matmul %13, %14, %cst_14 {dimension_numbers = #tpu.dot_dimension_numbers<[1], [0], [0], [1], [0, 0, 1, 1], [], []>} : vector<8x128xf32>, vector<128x32xf32>, vector<8x32xf32> -> vector<8x32xf32>
      %c0_15 = arith.constant 0 : index
      %c0_16 = arith.constant 0 : index
      %16 = vector.load %arg4[%c0_15, %c0_16] : memref<1x32xf32, #tpu.memory_space<vmem>>, vector<1x32xf32>
      %17 = vector.broadcast %16 : vector<1x32xf32> to vector<8x32xf32>
      %18 = arith.addf %15, %17 : vector<8x32xf32>
      %cst_17 = arith.constant 0.000000e+00 : f32
      %19 = vector.broadcast %cst_17 : f32 to vector<8x32xf32>
      %20 = arith.maximumf %18, %19 : vector<8x32xf32>
      %c0_18 = arith.constant 0 : index
      %c0_19 = arith.constant 0 : index
      %21 = vector.load %arg5[%c0_18, %c0_19] : memref<32x3xf32, #tpu.memory_space<vmem>>, vector<32x3xf32>
      %cst_20 = arith.constant dense<0.000000e+00> : vector<8x3xf32>
      %22 = tpu.matmul %20, %21, %cst_20 {dimension_numbers = #tpu.dot_dimension_numbers<[1], [0], [0], [1], [0, 0, 1, 1], [], []>} : vector<8x32xf32>, vector<32x3xf32>, vector<8x3xf32> -> vector<8x3xf32>
      %c0_21 = arith.constant 0 : index
      %c0_22 = arith.constant 0 : index
      %23 = vector.load %arg6[%c0_21, %c0_22] : memref<1x3xf32, #tpu.memory_space<vmem>>, vector<1x3xf32>
      %24 = vector.broadcast %23 : vector<1x3xf32> to vector<8x3xf32>
      %25 = arith.addf %22, %24 : vector<8x3xf32>
      %c0_23 = arith.constant 0 : index
      %c0_24 = arith.constant 0 : index
      %26 = vector.load %arg7[%c0_23, %c0_24] : memref<8x3xf32, #tpu.memory_space<vmem>>, vector<8x3xf32>
      tpu.vector_store %arg7[%c0_23, %c0_24], %25 {strides = array<i32>} : memref<8x3xf32, #tpu.memory_space<vmem>>, vector<8x3xf32>,
    } else {
    }
    return
  }
  func.func @transform_0(%arg0: i32) -> (i32, i32) {
    %c0_i32 = arith.constant 0 : i32
    %c0_i32_0 = arith.constant 0 : i32
    return %c0_i32, %arg0 : i32, i32
  }
  func.func @transform_1(%arg0: i32) -> (i32, i32) {
    %c0_i32 = arith.constant 0 : i32
    %c0_i32_0 = arith.constant 0 : i32
    return %arg0, %c0_i32 : i32, i32
  }
  func.func @transform_2(%arg0: i32) -> (i32, i32) {
    %c0_i32 = arith.constant 0 : i32
    %c0_i32_0 = arith.constant 0 : i32
    %c0_i32_1 = arith.constant 0 : i32
    return %c0_i32, %c0_i32_0 : i32, i32
  }
  func.func @transform_3(%arg0: i32) -> (i32, i32) {
    %c0_i32 = arith.constant 0 : i32
    %c0_i32_0 = arith.constant 0 : i32
    %c0_i32_1 = arith.constant 0 : i32
    return %c0_i32, %c0_i32_0 : i32, i32
  }
  func.func @transform_4(%arg0: i32) -> (i32, i32) {
    %c0_i32 = arith.constant 0 : i32
    %c0_i32_0 = arith.constant 0 : i32
    %c0_i32_1 = arith.constant 0 : i32
    return %c0_i32, %c0_i32_0 : i32, i32
  }
  func.func @transform_5(%arg0: i32) -> (i32, i32) {
    %c0_i32 = arith.constant 0 : i32
    %c0_i32_0 = arith.constant 0 : i32
    %c0_i32_1 = arith.constant 0 : i32
    return %c0_i32, %c0_i32_0 : i32, i32
  }
  func.func @transform_6(%arg0: i32) -> (i32, i32) {
    %c0_i32 = arith.constant 0 : i32
    %c0_i32_0 = arith.constant 0 : i32
    %c0_i32_1 = arith.constant 0 : i32
    return %c0_i32, %c0_i32_0 : i32, i32
  }
}

</mosaic_0001>

<llo_original>
// kernel: gat_classifier_forward.3
$region0: #{gat_classifier_forward.3}
  #allocation0 [shape = 'u32[]', space=smem, size = 0x4, offset = 0x4, fixed_abs, tag = 'smem constant byte address 0x4 - core index']
  #allocation1 [shape = 'u32[72,128]{1,0:T(1,128)}', space=vmem, size = 0x9000, scoped, tag = 'internal scratch']
  %s0 = inlined_call_operand.vmem [shape: f32[32,544], index: 0, kind: input, shape index: {}]
  %s1 = inlined_call_operand.vmem [shape: f32[1,32], index: 1, kind: input, shape index: {}]
  %s2 = inlined_call_operand.vmem [shape: f32[512,32], index: 2, kind: input, shape index: {}]
  %s3 = inlined_call_operand.vmem [shape: f32[32,32], index: 3, kind: input, shape index: {}]
  %s4 = inlined_call_operand.vmem [shape: f32[1,32], index: 4, kind: input, shape index: {}]
  %s5 = inlined_call_operand.vmem [shape: f32[32,132], index: 5, kind: input, shape index: {}]
  %s6 = inlined_call_operand.vmem [shape: f32[4,32], index: 6, kind: input, shape index: {}]
  %s7 = inlined_call_operand.vmem [shape: bf16[32,128], index: 7, kind: output, shape index: {0}]
  %s8 = inlined_call_operand.vmem [shape: f32[32,4], index: 8, kind: output, shape index: {1}]
  %s9 = inlined_call_operand.vmem [shape: f32[4,32], index: 9, kind: output, shape index: {2}]
  %10 = xla_tuple %s7, %s8, %s9
  %s11 = sld [smem:[#allocation0]]
  $region54: #{gat_classifier_forward.3} parent=0
    _
  %s13 = ssub.s32 1, %s11
  %s14 = scalar_select 0, %s13, %s11
  // Predicated region
  $region2: #{gat_classifier_forward.3} parent=0 // pred_check
    _
  $region3: #{gat_classifier_forward.3} parent=0 // pred_check_branch
    %16 = sbr.rel (0) target = $region5
  $region4: #{gat_classifier_forward.3} parent=0 // pred_region
    _
  $region5: #{gat_classifier_forward.3} parent=0 // pred_fallthru
    _
  // Predicated region
  $region6: #{gat_classifier_forward.3} parent=0 // pred_check
    _
  $region7: #{gat_classifier_forward.3} parent=0 // pred_check_branch
    %18 = sbr.rel (0) target = $region9
  $region8: #{gat_classifier_forward.3} parent=0 // pred_region
    _
  $region9: #{gat_classifier_forward.3} parent=0 // pred_fallthru
    _
  // Predicated region
  $region10: #{gat_classifier_forward.3} parent=0 // pred_check
    _
  $region11: #{gat_classifier_forward.3} parent=0 // pred_check_branch
    %20 = sbr.rel (0) target = $region13
  $region12: #{gat_classifier_forward.3} parent=0 // pred_region
    _
  $region13: #{gat_classifier_forward.3} parent=0 // pred_fallthru
    _
  // Predicated region
  $region14: #{gat_classifier_forward.3} parent=0 // pred_check
    _
  $region15: #{gat_classifier_forward.3} parent=0 // pred_check_branch
    %22 = sbr.rel (0) target = $region17
  $region16: #{gat_classifier_forward.3} parent=0 // pred_region
    _
  $region17: #{gat_classifier_forward.3} parent=0 // pred_fallthru
    _
  // Predicated region
  $region18: #{gat_classifier_forward.3} parent=0 // pred_check
    _
  $region19: #{gat_classifier_forward.3} parent=0 // pred_check_branch
    %24 = sbr.rel (0) target = $region21
  $region20: #{gat_classifier_forward.3} parent=0 // pred_region
    _
  $region21: #{gat_classifier_forward.3} parent=0 // pred_fallthru
    _
  // Predicated region
  $region22: #{gat_classifier_forward.3} parent=0 // pred_check
    _
  $region23: #{gat_classifier_forward.3} parent=0 // pred_check_branch
    %26 = sbr.rel (0) target = $region25
  $region24: #{gat_classifier_forward.3} parent=0 // pred_region
    _
  $region25: #{gat_classifier_forward.3} parent=0 // pred_fallthru
    _
  // Predicated region
  $region26: #{gat_classifier_forward.3} parent=0 // pred_check
    _
  $region27: #{gat_classifier_forward.3} parent=0 // pred_check_branch
    %28 = sbr.rel (0) target = $region29
  $region28: #{gat_classifier_forward.3} parent=0 // pred_region
    _
  $region29: #{gat_classifier_forward.3} parent=0 // pred_fallthru
    _
  %v29 = vld [vmem:[%s0] sm:$0xff]
  %v30 = vld [vmem:[%s0 + $0x8] sm:$0xff]
  %v31 = vld [vmem:[%s0 + $0x10] sm:$0xff]
  %v32 = vld [vmem:[%s0 + $0x18] sm:$0xff]
  %v33 = vld [vmem:[%s0 + $0x20] sm:$0xff]
  %v34 = vld [vmem:[%s0 + $0x28] sm:$0xff]
  %v35 = vld [vmem:[%s0 + $0x30] sm:$0xff]
  %v36 = vld [vmem:[%s0 + $0x38] sm:$0xff]
  %v37 = vld [vmem:[%s0 + $0x40] sm:$0xff]
  %v38 = vld [vmem:[%s0 + $0x48] sm:$0xff]
  %v39 = vld [vmem:[%s0 + $0x50] sm:$0xff]
  %v40 = vld [vmem:[%s0 + $0x58] sm:$0xff]
  %v41 = vld [vmem:[%s0 + $0x60] sm:$0xff]
  %v42 = vld [vmem:[%s0 + $0x68] sm:$0xff]
  %v43 = vld [vmem:[%s0 + $0x70] sm:$0xff]
  %v44 = vld [vmem:[%s0 + $0x78] sm:$0xff]
  %v45 = vld [vmem:[%s0 + $0x80] sm:$0xff]
  %v46 = vld [vmem:[%s0 + $0x88] sm:$0xff]
  %v47 = vld [vmem:[%s0 + $0x90] sm:$0xff]
  %v48 = vld [vmem:[%s0 + $0x98] sm:$0xff]
  %vm49 = vcmask 261120
  %v50 = vsel %vm49, %v33, 0.0
  %51 = vadd.xlane.f32.xlu0 %v50
  %v52 = vpop.xlane.xlu0 %51
  %v53 = vsel %vm49, %v38, 0.0
  %54 = vadd.xlane.f32.xlu0 %v53
  %v55 = vpop.xlane.xlu0 %54
  %v56 = vsel %vm49, %v43, 0.0
  %57 = vadd.xlane.f32.xlu0 %v56
  %v58 = vpop.xlane.xlu0 %57
  %v59 = vsel %vm49, %v48, 0.0
  %60 = vadd.xlane.f32.xlu0 %v59
  %v61 = vpop.xlane.xlu0 %60
  %v62 = vrcp.pop 32.0
  %v63 = vmul.f32 32.0, %v62
  %v64 = vsub.f32 1.0, %v63
  %v65 = vmul.f32 %v62, %v64
  %v66 = vadd.f32 %v62, %v65
  %vm67 = vweird.f32 %v62
  %v68 = vsel %vm67, %v62, %v66
  %v69 = vmul.f32 %v52, %v68
  %v70 = vmul.f32 %v55, %v68
  %v71 = vmul.f32 %v58, %v68
  %v72 = vmul.f32 %v61, %v68
  %v73 = vsub.f32 %v33, %v69
  %v74 = vsub.f32 %v38, %v70
  %v75 = vsub.f32 %v43, %v71
  %v76 = vsub.f32 %v48, %v72
  %v77 = vmul.f32 %v73, %v73
  %v78 = vmul.f32 %v74, %v74
  %v79 = vmul.f32 %v75, %v75
  %v80 = vmul.f32 %v76, %v76
  %v81 = vsel %vm49, %v77, 0.0
  %82 = vadd.xlane.f32.xlu0 %v81
  %v83 = vpop.xlane.xlu0 %82
  %v84 = vsel %vm49, %v78, 0.0
  %85 = vadd.xlane.f32.xlu0 %v84
  %v86 = vpop.xlane.xlu0 %85
  %v87 = vsel %vm49, %v79, 0.0
  %88 = vadd.xlane.f32.xlu0 %v87
  %v89 = vpop.xlane.xlu0 %88
  %v90 = vsel %vm49, %v80, 0.0
  %91 = vadd.xlane.f32.xlu0 %v90
  %v92 = vpop.xlane.xlu0 %91
  %v93 = vmul.f32 %v83, %v68
  %v94 = vmul.f32 %v86, %v68
  %v95 = vmul.f32 %v89, %v68
  %v96 = vmul.f32 %v92, %v68
  %v97 = vadd.f32 %v93, 1e-05
  %v98 = vadd.f32 %v94, 1e-05
  %v99 = vadd.f32 %v95, 1e-05
  %v100 = vadd.f32 %v96, 1e-05
  %v101 = vrsqrt.pop %v97
  %v102 = vmul.f32 %v101, %v97
  %v103 = vmul.f32 %v102, %v101
  %v104 = vmul.f32 0.5, %v103
  %v105 = vsub.f32 1.5, %v104
  %v106 = vmul.f32 %v101, %v105
  %vm107 = vweird.f32 %v97
  %vm108 = vweird.f32 %v101
  %vm109 = vmor %vm107, %vm108
  %v110 = vsel %vm109, %v101, %v106
  %v111 = vrsqrt.pop %v98
  %v112 = vmul.f32 %v111, %v98
  %v113 = vmul.f32 %v112, %v111
  %v114 = vmul.f32 0.5, %v113
  %v115 = vsub.f32 1.5, %v114
  %v116 = vmul.f32 %v111, %v115
  %vm117 = vweird.f32 %v98
  %vm118 = vweird.f32 %v111
  %vm119 = vmor %vm117, %vm118
  %v120 = vsel %vm119, %v111, %v116
  %v121 = vrsqrt.pop %v99
  %v122 = vmul.f32 %v121, %v99
  %v123 = vmul.f32 %v122, %v121
  %v124 = vmul.f32 0.5, %v123
  %v125 = vsub.f32 1.5, %v124
  %v126 = vmul.f32 %v121, %v125
  %vm127 = vweird.f32 %v99
  %vm128 = vweird.f32 %v121
  %vm129 = vmor %vm127, %vm128
  %v130 = vsel %vm129, %v121, %v126
  %v131 = vrsqrt.pop %v100
  %v132 = vmul.f32 %v131, %v100
  %v133 = vmul.f32 %v132, %v131
  %v134 = vmul.f32 0.5, %v133
  %v135 = vsub.f32 1.5, %v134
  %v136 = vmul.f32 %v131, %v135
  %vm137 = vweird.f32 %v100
  %vm138 = vweird.f32 %v131
  %vm139 = vmor %vm137, %vm138
  %v140 = vsel %vm139, %v131, %v136
  %v141 = vmul.f32 %v73, %v110
  %v142 = vmul.f32 %v74, %v120
  %v143 = vmul.f32 %v75, %v130
  %v144 = vmul.f32 %v76, %v140
  %v145 = vld [vmem:[%s2] sm:$0xff]
  %v146 = vld [vmem:[%s2 + $0x8] sm:$0xff]
  %v147 = vld [vmem:[%s2 + $0x10] sm:$0xff]
  %v148 = vld [vmem:[%s2 + $0x18] sm:$0xff]
  %v149 = vld [vmem:[%s2 + $0x20] sm:$0xff]
  %v150 = vld [vmem:[%s2 + $0x28] sm:$0xff]
  %v151 = vld [vmem:[%s2 + $0x30] sm:$0xff]
  %v152 = vld [vmem:[%s2 + $0x38] sm:$0xff]
  %v153 = vld [vmem:[%s2 + $0x40] sm:$0xff]
  %v154 = vld [vmem:[%s2 + $0x48] sm:$0xff]
  %v155 = vld [vmem:[%s2 + $0x50] sm:$0xff]
  %v156 = vld [vmem:[%s2 + $0x58] sm:$0xff]
  %v157 = vld [vmem:[%s2 + $0x60] sm:$0xff]
  %v158 = vld [vmem:[%s2 + $0x68] sm:$0xff]
  %v159 = vld [vmem:[%s2 + $0x70] sm:$0xff]
  %v160 = vld [vmem:[%s2 + $0x78] sm:$0xff]
  %v161 = vld [vmem:[%s2 + $0x80] sm:$0xff]
  %v162 = vld [vmem:[%s2 + $0x88] sm:$0xff]
  %v163 = vld [vmem:[%s2 + $0x90] sm:$0xff]
  %v164 = vld [vmem:[%s2 + $0x98] sm:$0xff]
  %v165 = vld [vmem:[%s2 + $0xa0] sm:$0xff]
  %v166 = vld [vmem:[%s2 + $0xa8] sm:$0xff]
  %v167 = vld [vmem:[%s2 + $0xb0] sm:$0xff]
  %v168 = vld [vmem:[%s2 + $0xb8] sm:$0xff]
  %v169 = vld [vmem:[%s2 + $0xc0] sm:$0xff]
  %v170 = vld [vmem:[%s2 + $0xc8] sm:$0xff]
  %v171 = vld [vmem:[%s2 + $0xd0] sm:$0xff]
  %v172 = vld [vmem:[%s2 + $0xd8] sm:$0xff]
  %v173 = vld [vmem:[%s2 + $0xe0] sm:$0xff]
  %v174 = vld [vmem:[%s2 + $0xe8] sm:$0xff]
  %v175 = vld [vmem:[%s2 + $0xf0] sm:$0xff]
  %v176 = vld [vmem:[%s2 + $0xf8] sm:$0xff]
  %v177 = vld [vmem:[%s2 + $0x100] sm:$0xff]
  %v178 = vld [vmem:[%s2 + $0x108] sm:$0xff]
  %v179 = vld [vmem:[%s2 + $0x110] sm:$0xff]
  %v180 = vld [vmem:[%s2 + $0x118] sm:$0xff]
  %v181 = vld [vmem:[%s2 + $0x120] sm:$0xff]
  %v182 = vld [vmem:[%s2 + $0x128] sm:$0xff]
  %v183 = vld [vmem:[%s2 + $0x130] sm:$0xff]
  %v184 = vld [vmem:[%s2 + $0x138] sm:$0xff]
  %v185 = vld [vmem:[%s2 + $0x140] sm:$0xff]
  %v186 = vld [vmem:[%s2 + $0x148] sm:$0xff]
  %v187 = vld [vmem:[%s2 + $0x150] sm:$0xff]
  %v188 = vld [vmem:[%s2 + $0x158] sm:$0xff]
  %v189 = vld [vmem:[%s2 + $0x160] sm:$0xff]
  %v190 = vld [vmem:[%s2 + $0x168] sm:$0xff]
  %v191 = vld [vmem:[%s2 + $0x170] sm:$0xff]
  %v192 = vld [vmem:[%s2 + $0x178] sm:$0xff]
  %v193 = vld [vmem:[%s2 + $0x180] sm:$0xff]
  %v194 = vld [vmem:[%s2 + $0x188] sm:$0xff]
  %v195 = vld [vmem:[%s2 + $0x190] sm:$0xff]
  %v196 = vld [vmem:[%s2 + $0x198] sm:$0xff]
  %v197 = vld [vmem:[%s2 + $0x1a0] sm:$0xff]
  %v198 = vld [vmem:[%s2 + $0x1a8] sm:$0xff]
  %v199 = vld [vmem:[%s2 + $0x1b0] sm:$0xff]
  %v200 = vld [vmem:[%s2 + $0x1b8] sm:$0xff]
  %v201 = vld [vmem:[%s2 + $0x1c0] sm:$0xff]
  %v202 = vld [vmem:[%s2 + $0x1c8] sm:$0xff]
  %v203 = vld [vmem:[%s2 + $0x1d0] sm:$0xff]
  %v204 = vld [vmem:[%s2 + $0x1d8] sm:$0xff]
  %v205 = vld [vmem:[%s2 + $0x1e0] sm:$0xff]
  %v206 = vld [vmem:[%s2 + $0x1e8] sm:$0xff]
  %v207 = vld [vmem:[%s2 + $0x1f0] sm:$0xff]
  %v208 = vld [vmem:[%s2 + $0x1f8] sm:$0xff]
  %v209 = vld [vmem:[%s1] sm:$0x1]
  %v211 = vperm.slane %v209, 0
  %v213 = vmul.f32 %v141, %v211
  %v214 = vmul.f32 %v142, %v211
  %v215 = vmul.f32 %v143, %v211
  %v216 = vmul.f32 %v144, %v211
  %v217 = vld [vmem:[%s3] sm:$0xff]
  %v218 = vld [vmem:[%s3 + $0x8] sm:$0xff]
  %v219 = vld [vmem:[%s3 + $0x10] sm:$0xff]
  %v220 = vld [vmem:[%s3 + $0x18] sm:$0xff]
  %v222 = vsel %vm49, %v213, 0
  %v225 = vsel %vm49, %v214, 0
  %v228 = vsel %vm49, %v215, 0
  %v231 = vsel %vm49, %v216, 0
  %233 = vmatpush.msra.mxu0 0.0
  %234 = vmatpush.msra.mxu0 0.0
  %235 = vmatpush.msra.mxu0 0.0
  %236 = vmatpush.msra.mxu0 0.0
  %237 = vmatpush.msra.mxu0 0.0
  %238 = vmatpush.msra.mxu0 0.0
  %239 = vmatpush.msra.mxu0 0.0
  %240 = vmatpush.msra.mxu0 0.0
  %241 = vmatpush.msra.mxu0 0.0
  %242 = vmatpush.msra.mxu0 0.0
  %243 = vmatpush.msra.mxu0 0.0
  %244 = vmatpush.msra.mxu0 0.0
  %245 = vmatpush.msra.mxu0 %v220
  %246 = vmatpush.msra.mxu0 %v219
  %247 = vmatpush.msra.mxu0 %v218
  %248 = vmatpush.msra.mxu0 %v217
  %249 = vmatmul.f32.gmra.mxu0 %v222
  %v250 = vpop.f32.mrf.mxu0
  %v251 = vadd.f32 0.0, %v250
  %252 = vmatmul.f32.gmra.mxu0 %v225
  %v253 = vpop.f32.mrf.mxu0
  %v254 = vadd.f32 0.0, %v253
  %255 = vmatmul.f32.gmra.mxu0 %v228
  %v256 = vpop.f32.mrf.mxu0
  %v257 = vadd.f32 0.0, %v256
  %258 = vmatmul.f32.gmra.mxu0 %v231
  %v259 = vpop.f32.mrf.mxu0
  %v260 = vadd.f32 0.0, %v259
  %261 = vdwg.mxu0
  %262 = vmatpush.msra.mxu0 %v160
  %263 = vmatpush.msra.mxu0 %v159
  %264 = vmatpush.msra.mxu0 %v158
  %265 = vmatpush.msra.mxu0 %v157
  %266 = vmatpush.msra.mxu0 %v156
  %267 = vmatpush.msra.mxu0 %v155
  %268 = vmatpush.msra.mxu0 %v154
  %269 = vmatpush.msra.mxu0 %v153
  %270 = vmatpush.msra.mxu0 %v152
  %271 = vmatpush.msra.mxu0 %v151
  %272 = vmatpush.msra.mxu0 %v150
  %273 = vmatpush.msra.mxu0 %v149
  %274 = vmatpush.msra.mxu0 %v148
  %275 = vmatpush.msra.mxu0 %v147
  %276 = vmatpush.msra.mxu0 %v146
  %277 = vmatpush.msra.mxu0 %v145
  %278 = vmatmul.f32.gmra.mxu0 %v29
  %v279 = vpop.f32.mrf.mxu0
  %v280 = vadd.f32 %v251, %v279
  %281 = vmatmul.f32.gmra.mxu0 %v34
  %v282 = vpop.f32.mrf.mxu0
  %v283 = vadd.f32 %v254, %v282
  %284 = vmatmul.f32.gmra.mxu0 %v39
  %v285 = vpop.f32.mrf.mxu0
  %v286 = vadd.f32 %v257, %v285
  %287 = vmatmul.f32.gmra.mxu0 %v44
  %v288 = vpop.f32.mrf.mxu0
  %v289 = vadd.f32 %v260, %v288
  %290 = vdwg.mxu0
  %291 = vmatpush.msra.mxu0 %v176
  %292 = vmatpush.msra.mxu0 %v175
  %293 = vmatpush.msra.mxu0 %v174
  %294 = vmatpush.msra.mxu0 %v173
  %295 = vmatpush.msra.mxu0 %v172
  %296 = vmatpush.msra.mxu0 %v171
  %297 = vmatpush.msra.mxu0 %v170
  %298 = vmatpush.msra.mxu0 %v169
  %299 = vmatpush.msra.mxu0 %v168
  %300 = vmatpush.msra.mxu0 %v167
  %301 = vmatpush.msra.mxu0 %v166
  %302 = vmatpush.msra.mxu0 %v165
  %303 = vmatpush.msra.mxu0 %v164
  %304 = vmatpush.msra.mxu0 %v163
  %305 = vmatpush.msra.mxu0 %v162
  %306 = vmatpush.msra.mxu0 %v161
  %307 = vmatmul.f32.gmra.mxu0 %v30
  %v308 = vpop.f32.mrf.mxu0
  %v309 = vadd.f32 %v280, %v308
  %310 = vmatmul.f32.gmra.mxu0 %v35
  %v311 = vpop.f32.mrf.mxu0
  %v312 = vadd.f32 %v283, %v311
  %313 = vmatmul.f32.gmra.mxu0 %v40
  %v314 = vpop.f32.mrf.mxu0
  %v315 = vadd.f32 %v286, %v314
  %316 = vmatmul.f32.gmra.mxu0 %v45
  %v317 = vpop.f32.mrf.mxu0
  %v318 = vadd.f32 %v289, %v317
  %319 = vdwg.mxu0
  %320 = vmatpush.msra.mxu0 %v192
  %321 = vmatpush.msra.mxu0 %v191
  %322 = vmatpush.msra.mxu0 %v190
  %323 = vmatpush.msra.mxu0 %v189
  %324 = vmatpush.msra.mxu0 %v188
  %325 = vmatpush.msra.mxu0 %v187
  %326 = vmatpush.msra.mxu0 %v186
  %327 = vmatpush.msra.mxu0 %v185
  %328 = vmatpush.msra.mxu0 %v184
  %329 = vmatpush.msra.mxu0 %v183
  %330 = vmatpush.msra.mxu0 %v182
  %331 = vmatpush.msra.mxu0 %v181
  %332 = vmatpush.msra.mxu0 %v180
  %333 = vmatpush.msra.mxu0 %v179
  %334 = vmatpush.msra.mxu0 %v178
  %335 = vmatpush.msra.mxu0 %v177
  %336 = vmatmul.f32.gmra.mxu0 %v31
  %v337 = vpop.f32.mrf.mxu0
  %v338 = vadd.f32 %v309, %v337
  %339 = vmatmul.f32.gmra.mxu0 %v36
  %v340 = vpop.f32.mrf.mxu0
  %v341 = vadd.f32 %v312, %v340
  %342 = vmatmul.f32.gmra.mxu0 %v41
  %v343 = vpop.f32.mrf.mxu0
  %v344 = vadd.f32 %v315, %v343
  %345 = vmatmul.f32.gmra.mxu0 %v46
  %v346 = vpop.f32.mrf.mxu0
  %v347 = vadd.f32 %v318, %v346
  %348 = vdwg.mxu0
  %349 = vmatpush.msra.mxu0 %v208
  %350 = vmatpush.msra.mxu0 %v207
  %351 = vmatpush.msra.mxu0 %v206
  %352 = vmatpush.msra.mxu0 %v205
  %353 = vmatpush.msra.mxu0 %v204
  %354 = vmatpush.msra.mxu0 %v203
  %355 = vmatpush.msra.mxu0 %v202
  %356 = vmatpush.msra.mxu0 %v201
  %357 = vmatpush.msra.mxu0 %v200
  %358 = vmatpush.msra.mxu0 %v199
  %359 = vmatpush.msra.mxu0 %v198
  %360 = vmatpush.msra.mxu0 %v197
  %361 = vmatpush.msra.mxu0 %v196
  %362 = vmatpush.msra.mxu0 %v195
  %363 = vmatpush.msra.mxu0 %v194
  %364 = vmatpush.msra.mxu0 %v193
  %365 = vmatmul.f32.gmra.mxu0 %v32
  %v366 = vpop.f32.mrf.mxu0
  %v367 = vadd.f32 %v338, %v366
  %368 = vmatmul.f32.gmra.mxu0 %v37
  %v369 = vpop.f32.mrf.mxu0
  %v370 = vadd.f32 %v341, %v369
  %371 = vmatmul.f32.gmra.mxu0 %v42
  %v372 = vpop.f32.mrf.mxu0
  %v373 = vadd.f32 %v344, %v372
  %374 = vmatmul.f32.gmra.mxu0 %v47
  %v375 = vpop.f32.mrf.mxu0
  %v376 = vadd.f32 %v347, %v375
  %377 = vdwg.mxu0
  %v378 = vld [vmem:[%s4] sm:$0x1]
  %v380 = vperm.slane %v378, 0
  %v382 = vadd.f32 %v367, %v380
  %v383 = vadd.f32 %v370, %v380
  %v384 = vadd.f32 %v373, %v380
  %v385 = vadd.f32 %v376, %v380
  %v386 = vmax.f32 %v382, 0.0
  %v387 = vmax.f32 %v383, 0.0
  %v388 = vmax.f32 %v384, 0.0
  %v389 = vmax.f32 %v385, 0.0
  %v390 = vld [vmem:[%s5] sm:$0xff]
  %v391 = vld [vmem:[%s5 + $0x8] sm:$0xff]
  %v392 = vld [vmem:[%s5 + $0x10] sm:$0xff]
  %v393 = vld [vmem:[%s5 + $0x18] sm:$0xff]
  %v394 = vld [vmem:[%s5 + $0x20] sm:$0xff]
  %v395 = vld [vmem:[%s5 + $0x28] sm:$0xff]
  %v396 = vld [vmem:[%s5 + $0x30] sm:$0xff]
  %v397 = vld [vmem:[%s5 + $0x38] sm:$0xff]
  %v399 = vsel %vm49, %v386, 0
  %v402 = vsel %vm49, %v387, 0
  %v405 = vsel %vm49, %v388, 0
  %v408 = vsel %vm49, %v389, 0
  %410 = vmatpush.msra.mxu0 0.0
  %411 = vmatpush.msra.mxu0 0.0
  %412 = vmatpush.msra.mxu0 0.0
  %413 = vmatpush.msra.mxu0 0.0
  %414 = vmatpush.msra.mxu0 0.0
  %415 = vmatpush.msra.mxu0 0.0
  %416 = vmatpush.msra.mxu0 0.0
  %417 = vmatpush.msra.mxu0 0.0
  %418 = vmatpush.msra.mxu0 0.0
  %419 = vmatpush.msra.mxu0 0.0
  %420 = vmatpush.msra.mxu0 0.0
  %421 = vmatpush.msra.mxu0 0.0
  %422 = vmatpush.msra.mxu0 %v396
  %423 = vmatpush.msra.mxu0 %v394
  %424 = vmatpush.msra.mxu0 %v392
  %425 = vmatpush.msra.mxu0 %v390
  %426 = vmatmul.f32.gmra.mxu0 %v399
  %v427 = vpop.f32.mrf.mxu0
  %v428 = vadd.f32 0.0, %v427
  %429 = vmatmul.f32.gmra.mxu0 %v402
  %v430 = vpop.f32.mrf.mxu0
  %v431 = vadd.f32 0.0, %v430
  %432 = vmatmul.f32.gmra.mxu0 %v405
  %v433 = vpop.f32.mrf.mxu0
  %v434 = vadd.f32 0.0, %v433
  %435 = vmatmul.f32.gmra.mxu0 %v408
  %v436 = vpop.f32.mrf.mxu0
  %v437 = vadd.f32 0.0, %v436
  %438 = vdwg.mxu0
  %439 = vmatpush.msra.mxu0 0.0
  %440 = vmatpush.msra.mxu0 0.0
  %441 = vmatpush.msra.mxu0 0.0
  %442 = vmatpush.msra.mxu0 0.0
  %443 = vmatpush.msra.mxu0 0.0
  %444 = vmatpush.msra.mxu0 0.0
  %445 = vmatpush.msra.mxu0 0.0
  %446 = vmatpush.msra.mxu0 0.0
  %447 = vmatpush.msra.mxu0 0.0
  %448 = vmatpush.msra.mxu0 0.0
  %449 = vmatpush.msra.mxu0 0.0
  %450 = vmatpush.msra.mxu0 0.0
  %451 = vmatpush.msra.mxu0 %v397
  %452 = vmatpush.msra.mxu0 %v395
  %453 = vmatpush.msra.mxu0 %v393
  %454 = vmatpush.msra.mxu0 %v391
  %455 = vmatmul.f32.gmra.mxu0 %v399
  %v456 = vpop.f32.mrf.mxu0
  %v457 = vadd.f32 0.0, %v456
  %458 = vmatmul.f32.gmra.mxu0 %v402
  %v459 = vpop.f32.mrf.mxu0
  %v460 = vadd.f32 0.0, %v459
  %461 = vmatmul.f32.gmra.mxu0 %v405
  %v462 = vpop.f32.mrf.mxu0
  %v463 = vadd.f32 0.0, %v462
  %464 = vmatmul.f32.gmra.mxu0 %v408
  %v465 = vpop.f32.mrf.mxu0
  %v466 = vadd.f32 0.0, %v465
  %467 = vdwg.mxu0
  %v468 = vpack.c.bf16 %v428, %v428
  %v469 = vpack.c.bf16 %v431, %v431
  %v470 = vpack.c.bf16 %v434, %v434
  %v471 = vpack.c.bf16 %v437, %v437
  %472 = vst [vmem:[%s7] sm:$0xf] %v468
  %473 = vst [vmem:[%s7 + $0x4] sm:$0xf] %v469
  %474 = vst [vmem:[%s7 + $0x8] sm:$0xf] %v470
  %475 = vst [vmem:[%s7 + $0xc] sm:$0xf] %v471
  %vm476 = vcmask 31744
  %477 = vst.msk [vmem:[%s8] sm:$0xff] %vm476, %v457
  %478 = vst.msk [vmem:[%s8 + $0x8] sm:$0xff] %vm476, %v460
  %479 = vst.msk [vmem:[%s8 + $0x10] sm:$0xff] %vm476, %v463
  %480 = vst.msk [vmem:[%s8 + $0x18] sm:$0xff] %vm476, %v466
  %v481 = vld [vmem:[%s6] sm:$0xf]
  %v483 = vsel %vm49, %v481, 0
  %485 = vmatpush.xpose.msra.mxu0 0.0
  %486 = vmatpush.xpose.msra.mxu0 0.0
  %487 = vmatpush.xpose.msra.mxu0 0.0
  %488 = vmatpush.xpose.msra.mxu0 0.0
  %489 = vmatpush.xpose.msra.mxu0 0.0
  %490 = vmatpush.xpose.msra.mxu0 0.0
  %491 = vmatpush.xpose.msra.mxu0 0.0
  %492 = vmatpush.xpose.msra.mxu0 0.0
  %493 = vmatpush.xpose.msra.mxu0 0.0
  %494 = vmatpush.xpose.msra.mxu0 0.0
  %495 = vmatpush.xpose.msra.mxu0 0.0
  %496 = vmatpush.xpose.msra.mxu0 0.0
  %497 = vmatpush.xpose.msra.mxu0 %v408
  %498 = vmatpush.xpose.msra.mxu0 %v405
  %499 = vmatpush.xpose.msra.mxu0 %v402
  %500 = vmatpush.xpose.msra.mxu0 %v399
  %501 = vmatmul.f32.gmra.mxu0 %v483
  %v502 = vpop.f32.mrf.mxu0
  %v503 = vadd.f32 0.0, %v502
  %504 = vdwg.mxu0
  %vm505 = vcmask 257024
  %506 = vst.msk [vmem:[%s9] sm:$0xf] %vm505, %v503
  // Predicated region
  $region30: #{gat_classifier_forward.3} parent=0 // pred_check
    _
  $region31: #{gat_classifier_forward.3} parent=0 // pred_check_branch
    %508 = sbr.rel (0) target = $region33
  $region32: #{gat_classifier_forward.3} parent=0 // pred_region
    _
  $region33: #{gat_classifier_forward.3} parent=0 // pred_fallthru
    _
  // Predicated region
  $region34: #{gat_classifier_forward.3} parent=0 // pred_check
    _
  $region35: #{gat_classifier_forward.3} parent=0 // pred_check_branch
    %510 = sbr.rel (0) target = $region37
  $region36: #{gat_classifier_forward.3} parent=0 // pred_region
    _
  $region37: #{gat_classifier_forward.3} parent=0 // pred_fallthru
    _
  // Predicated region
  $region38: #{gat_classifier_forward.3} parent=0 // pred_check
    _
  $region39: #{gat_classifier_forward.3} parent=0 // pred_check_branch
    %512 = sbr.rel (0) target = $region41
  $region40: #{gat_classifier_forward.3} parent=0 // pred_region
    _
  $region41: #{gat_classifier_forward.3} parent=0 // pred_fallthru
    _
  // Predicated region
  $region42: #{gat_classifier_forward.3} parent=0 // pred_check
    _
  $region43: #{gat_classifier_forward.3} parent=0 // pred_check_branch
    %514 = sbr.rel (0) target = $region45
  $region44: #{gat_classifier_forward.3} parent=0 // pred_region
    _
  $region45: #{gat_classifier_forward.3} parent=0 // pred_fallthru
    _
  // Predicated region
  $region46: #{gat_classifier_forward.3} parent=0 // pred_check
    _
  $region47: #{gat_classifier_forward.3} parent=0 // pred_check_branch
    %516 = sbr.rel (0) target = $region49
  $region48: #{gat_classifier_forward.3} parent=0 // pred_region
    _
  $region49: #{gat_classifier_forward.3} parent=0 // pred_fallthru
    _
  // Predicated region
  $region50: #{gat_classifier_forward.3} parent=0 // pred_check
    _
  $region51: #{gat_classifier_forward.3} parent=0 // pred_check_branch
    %518 = sbr.rel (0) target = $region53
  $region52: #{gat_classifier_forward.3} parent=0 // pred_region
    _
  $region53: #{gat_classifier_forward.3} parent=0 // pred_fallthru
    _

// kernel: gat_classifier_forward.5
$region0: #{gat_classifier_forward.5}
  #allocation0 [shape = 'u32[]', space=smem, size = 0x4, offset = 0x4, fixed_abs, tag = 'smem constant byte address 0x4 - core index']
  #allocation1 [shape = 'u32[72,128]{1,0:T(1,128)}', space=vmem, size = 0x9000, scoped, tag = 'internal scratch']
  #allocation2 [shape = 'f32[8,128]{1,0:T(8,128)}', space=vmem, size = 0x1000, scoped, tag = 'scratch operand']
  %s0 = inlined_call_operand.vmem [shape: f32[8,32], index: 0, kind: input, shape index: {}]
  %s1 = inlined_call_operand.vmem [shape: bf16[32,128], index: 1, kind: input, shape index: {}]
  %s2 = inlined_call_operand.vmem [shape: f32[128,32], index: 2, kind: input, shape index: {}]
  %s3 = inlined_call_operand.vmem [shape: f32[1,32], index: 3, kind: input, shape index: {}]
  %s4 = inlined_call_operand.vmem [shape: f32[32,3], index: 4, kind: input, shape index: {}]
  %s5 = inlined_call_operand.vmem [shape: f32[1,3], index: 5, kind: input, shape index: {}]
  %s6 = inlined_call_operand.vmem [shape: f32[8,3], index: 6, kind: output, shape index: {}]
  %s7 = sld [smem:[#allocation0]]
  $region42: #{gat_classifier_forward.5} parent=0
    _
  %s9 = ssub.s32 1, %s7
  %s10 = scalar_select 0, %s9, %s7
  // Predicated region
  $region2: #{gat_classifier_forward.5} parent=0 // pred_check
    _
  $region3: #{gat_classifier_forward.5} parent=0 // pred_check_branch
    %12 = sbr.rel (0) target = $region5
  $region4: #{gat_classifier_forward.5} parent=0 // pred_region
    _
  $region5: #{gat_classifier_forward.5} parent=0 // pred_fallthru
    _
  // Predicated region
  $region6: #{gat_classifier_forward.5} parent=0 // pred_check
    _
  $region7: #{gat_classifier_forward.5} parent=0 // pred_check_branch
    %14 = sbr.rel (0) target = $region9
  $region8: #{gat_classifier_forward.5} parent=0 // pred_region
    _
  $region9: #{gat_classifier_forward.5} parent=0 // pred_fallthru
    _
  // Predicated region
  $region10: #{gat_classifier_forward.5} parent=0 // pred_check
    _
  $region11: #{gat_classifier_forward.5} parent=0 // pred_check_branch
    %16 = sbr.rel (0) target = $region13
  $region12: #{gat_classifier_forward.5} parent=0 // pred_region
    _
  $region13: #{gat_classifier_forward.5} parent=0 // pred_fallthru
    _
  // Predicated region
  $region14: #{gat_classifier_forward.5} parent=0 // pred_check
    _
  $region15: #{gat_classifier_forward.5} parent=0 // pred_check_branch
    %18 = sbr.rel (0) target = $region17
  $region16: #{gat_classifier_forward.5} parent=0 // pred_region
    _
  $region17: #{gat_classifier_forward.5} parent=0 // pred_fallthru
    _
  // Predicated region
  $region18: #{gat_classifier_forward.5} parent=0 // pred_check
    _
  $region19: #{gat_classifier_forward.5} parent=0 // pred_check_branch
    %20 = sbr.rel (0) target = $region21
  $region20: #{gat_classifier_forward.5} parent=0 // pred_region
    _
  $region21: #{gat_classifier_forward.5} parent=0 // pred_fallthru
    _
  // Predicated region
  $region22: #{gat_classifier_forward.5} parent=0 // pred_check
    _
  $region23: #{gat_classifier_forward.5} parent=0 // pred_check_branch
    %22 = sbr.rel (0) target = $region25
  $region24: #{gat_classifier_forward.5} parent=0 // pred_region
    _
  $region25: #{gat_classifier_forward.5} parent=0 // pred_fallthru
    _
  %p23 = scmp.eq.s32.totalorder 0, 0
  // Predicated region
  $region26: #{gat_classifier_forward.5} parent=0 // pred_check
    %p24 = pneg %p23
  $region27: #{gat_classifier_forward.5} parent=0 // pred_check_branch
    %26 = sbr.rel (%p24) target = $region29
  $region28: #{gat_classifier_forward.5} parent=0 // pred_region
    %27 = vst [vmem:[#allocation2] sm:$0xff] 0.0
  $region29: #{gat_classifier_forward.5} parent=0 // pred_fallthru
    _
  %v28 = vld [vmem:[#allocation2] sm:$0xff]
  %v29 = vld [vmem:[%s0] sm:$0xff]
  %v30 = vld [vmem:[%s1] sm:$0xf]
  %v31 = vld [vmem:[%s1 + $0x4] sm:$0xf]
  %v32 = vld [vmem:[%s1 + $0x8] sm:$0xf]
  %v33 = vld [vmem:[%s1 + $0xc] sm:$0xf]
  %v34 = vunpack.c.l.bf16 %v30
  %v35 = vunpack.c.l.bf16 %v31
  %v36 = vunpack.c.l.bf16 %v32
  %v37 = vunpack.c.l.bf16 %v33
  %vm38 = vcmask 261120
  %v40 = vsel %vm38, %v29, 0
  %42 = vmatpush.msra.mxu0 0.0
  %43 = vmatpush.msra.mxu0 0.0
  %44 = vmatpush.msra.mxu0 0.0
  %45 = vmatpush.msra.mxu0 0.0
  %46 = vmatpush.msra.mxu0 0.0
  %47 = vmatpush.msra.mxu0 0.0
  %48 = vmatpush.msra.mxu0 0.0
  %49 = vmatpush.msra.mxu0 0.0
  %50 = vmatpush.msra.mxu0 0.0
  %51 = vmatpush.msra.mxu0 0.0
  %52 = vmatpush.msra.mxu0 0.0
  %53 = vmatpush.msra.mxu0 0.0
  %54 = vmatpush.msra.mxu0 %v37
  %55 = vmatpush.msra.mxu0 %v36
  %56 = vmatpush.msra.mxu0 %v35
  %57 = vmatpush.msra.mxu0 %v34
  %58 = vmatmul.f32.gmra.mxu0 %v40
  %v59 = vpop.f32.mrf.mxu0
  %v60 = vadd.f32 0.0, %v59
  %61 = vdwg.mxu0
  %v62 = vadd.f32 %v28, %v60
  %63 = vst [vmem:[#allocation2] sm:$0xff] %v62
  // Predicated region
  $region30: #{gat_classifier_forward.5} parent=0 // pred_check
    %p64 = pneg %p23
  $region31: #{gat_classifier_forward.5} parent=0 // pred_check_branch
    %66 = sbr.rel (%p64) target = $region33
  $region32: #{gat_classifier_forward.5} parent=0 // pred_region
    %v67 = vld [vmem:[#allocation2] sm:$0xff]
    %v68 = vld [vmem:[%s2] sm:$0xff]
    %v69 = vld [vmem:[%s2 + $0x8] sm:$0xff]
    %v70 = vld [vmem:[%s2 + $0x10] sm:$0xff]
    %v71 = vld [vmem:[%s2 + $0x18] sm:$0xff]
    %v72 = vld [vmem:[%s2 + $0x20] sm:$0xff]
    %v73 = vld [vmem:[%s2 + $0x28] sm:$0xff]
    %v74 = vld [vmem:[%s2 + $0x30] sm:$0xff]
    %v75 = vld [vmem:[%s2 + $0x38] sm:$0xff]
    %v76 = vld [vmem:[%s2 + $0x40] sm:$0xff]
    %v77 = vld [vmem:[%s2 + $0x48] sm:$0xff]
    %v78 = vld [vmem:[%s2 + $0x50] sm:$0xff]
    %v79 = vld [vmem:[%s2 + $0x58] sm:$0xff]
    %v80 = vld [vmem:[%s2 + $0x60] sm:$0xff]
    %v81 = vld [vmem:[%s2 + $0x68] sm:$0xff]
    %v82 = vld [vmem:[%s2 + $0x70] sm:$0xff]
    %v83 = vld [vmem:[%s2 + $0x78] sm:$0xff]
    %v84 = vld [vmem:[%s3] sm:$0x1]
    %v86 = vperm.slane %v84, 0
    %88 = vmatpush.msra.mxu0 %v83
    %89 = vmatpush.msra.mxu0 %v82
    %90 = vmatpush.msra.mxu0 %v81
    %91 = vmatpush.msra.mxu0 %v80
    %92 = vmatpush.msra.mxu0 %v79
    %93 = vmatpush.msra.mxu0 %v78
    %94 = vmatpush.msra.mxu0 %v77
    %95 = vmatpush.msra.mxu0 %v76
    %96 = vmatpush.msra.mxu0 %v75
    %97 = vmatpush.msra.mxu0 %v74
    %98 = vmatpush.msra.mxu0 %v73
    %99 = vmatpush.msra.mxu0 %v72
    %100 = vmatpush.msra.mxu0 %v71
    %101 = vmatpush.msra.mxu0 %v70
    %102 = vmatpush.msra.mxu0 %v69
    %103 = vmatpush.msra.mxu0 %v68
    %104 = vmatmul.f32.gmra.mxu0 %v67
    %v105 = vpop.f32.mrf.mxu0
    %v106 = vadd.f32 %v86, %v105
    %107 = vdwg.mxu0
    %v108 = vmax.f32 %v106, 0.0
    %v109 = vld [vmem:[%s4] sm:$0xff]
    %v110 = vld [vmem:[%s4 + $0x8] sm:$0xff]
    %v111 = vld [vmem:[%s4 + $0x10] sm:$0xff]
    %v112 = vld [vmem:[%s4 + $0x18] sm:$0xff]
    %v113 = vld [vmem:[%s5] sm:$0x1]
    %v115 = vperm.slane %v113, 0
    %v118 = vsel %vm38, %v108, 0
    %120 = vmatpush.msra.mxu0 0.0
    %121 = vmatpush.msra.mxu0 0.0
    %122 = vmatpush.msra.mxu0 0.0
    %123 = vmatpush.msra.mxu0 0.0
    %124 = vmatpush.msra.mxu0 0.0
    %125 = vmatpush.msra.mxu0 0.0
    %126 = vmatpush.msra.mxu0 0.0
    %127 = vmatpush.msra.mxu0 0.0
    %128 = vmatpush.msra.mxu0 0.0
    %129 = vmatpush.msra.mxu0 0.0
    %130 = vmatpush.msra.mxu0 0.0
    %131 = vmatpush.msra.mxu0 0.0
    %132 = vmatpush.msra.mxu0 %v112
    %133 = vmatpush.msra.mxu0 %v111
    %134 = vmatpush.msra.mxu0 %v110
    %135 = vmatpush.msra.mxu0 %v109
    %136 = vmatmul.f32.gmra.mxu0 %v118
    %v137 = vpop.f32.mrf.mxu0
    %v138 = vadd.f32 %v115, %v137
    %139 = vdwg.mxu0
    %vm140 = vcmask 23552
    %141 = vst.msk [vmem:[%s6] sm:$0xff] %vm140, %v138
  $region33: #{gat_classifier_forward.5} parent=0 // pred_fallthru
    _
  // Predicated region
  $region34: #{gat_classifier_forward.5} parent=0 // pred_check
    _
  $region35: #{gat_classifier_forward.5} parent=0 // pred_check_branch
    %143 = sbr.rel (0) target = $region37
  $region36: #{gat_classifier_forward.5} parent=0 // pred_region
    _
  $region37: #{gat_classifier_forward.5} parent=0 // pred_fallthru
    _
  // Predicated region
  $region38: #{gat_classifier_forward.5} parent=0 // pred_check
    _
  $region39: #{gat_classifier_forward.5} parent=0 // pred_check_branch
    %145 = sbr.rel (0) target = $region41
  $region40: #{gat_classifier_forward.5} parent=0 // pred_region
    _
  $region41: #{gat_classifier_forward.5} parent=0 // pred_fallthru
    _

// kernel: gat_classifier_forward.4
$region0: #{gat_classifier_forward.4}
  #allocation0 [shape = 'u32[]', space=smem, size = 0x4, offset = 0x4, fixed_abs, tag = 'smem constant byte address 0x4 - core index']
  #allocation1 [shape = 'u32[72,128]{1,0:T(1,128)}', space=vmem, size = 0x9000, scoped, tag = 'internal scratch']
  #allocation2 [shape = 'f32[32,4]{1,0:T(8,128)}', space=vmem, size = 0x4000, scoped, tag = 'scratch operand']
  #allocation3 [shape = 'f32[32,4]{1,0:T(8,128)}', space=vmem, size = 0x4000, scoped, tag = 'scratch operand']
  #allocation4 [shape = 'f32[32,128]{1,0:T(8,128)}', space=vmem, size = 0x4000, scoped, tag = 'scratch operand']
  #allocation5 [shape = 's32[1]{0}', space=sflag, size = 0x4, scoped, tag = 'scoped memory for gat_classifier_forward.4']
  #allocation6 [shape = 's32[1,1]{1,0:T(1,128)S(6)}', space=smem, size = 0x200, scoped, tag = 'prefetched SMEM operand 0']
  %s0 = inlined_call_operand.<no memory space> [shape: s32[1,1], index: 0, kind: input, shape index: {}]
  %s1 = inlined_call_operand.vmem [shape: f32[32,4], index: 1, kind: input, shape index: {}]
  %s2 = inlined_call_operand.vmem [shape: f32[4,32], index: 2, kind: input, shape index: {}]
  %s3 = inlined_call_operand.vmem [shape: bf16[32,128], index: 3, kind: input, shape index: {}]
  %s4 = inlined_call_operand.vmem [shape: s8[32,32], index: 4, kind: input, shape index: {}]
  %s5 = inlined_call_operand.vmem [shape: f32[1,128], index: 5, kind: input, shape index: {}]
  %s6 = inlined_call_operand.vmem [shape: f32[1,128], index: 6, kind: input, shape index: {}]
  %s7 = inlined_call_operand.vmem [shape: f32[1,128], index: 7, kind: input, shape index: {}]
  %s8 = inlined_call_operand.vmem [shape: bf16[32,128], index: 8, kind: output, shape index: {}]
  %s9 = sld [smem:[#allocation0]]
  $region50: #{gat_classifier_forward.4} parent=0
    _
  %s11 = ssub.s32 1, %s9
  %s12 = scalar_select 0, %s11, %s9
  %13 = sst [smem:[#allocation6]] %s0
  // Predicated region
  $region2: #{gat_classifier_forward.4} parent=0 // pred_check
    _
  $region3: #{gat_classifier_forward.4} parent=0 // pred_check_branch
    %15 = sbr.rel (0) target = $region5
  $region4: #{gat_classifier_forward.4} parent=0 // pred_region
    _
  $region5: #{gat_classifier_forward.4} parent=0 // pred_fallthru
    _
  // Predicated region
  $region6: #{gat_classifier_forward.4} parent=0 // pred_check
    _
  $region7: #{gat_classifier_forward.4} parent=0 // pred_check_branch
    %17 = sbr.rel (0) target = $region9
  $region8: #{gat_classifier_forward.4} parent=0 // pred_region
    _
  $region9: #{gat_classifier_forward.4} parent=0 // pred_fallthru
    _
  // Predicated region
  $region10: #{gat_classifier_forward.4} parent=0 // pred_check
    _
  $region11: #{gat_classifier_forward.4} parent=0 // pred_check_branch
    %19 = sbr.rel (0) target = $region13
  $region12: #{gat_classifier_forward.4} parent=0 // pred_region
    _
  $region13: #{gat_classifier_forward.4} parent=0 // pred_fallthru
    _
  // Predicated region
  $region14: #{gat_classifier_forward.4} parent=0 // pred_check
    _
  $region15: #{gat_classifier_forward.4} parent=0 // pred_check_branch
    %21 = sbr.rel (0) target = $region17
  $region16: #{gat_classifier_forward.4} parent=0 // pred_region
    _
  $region17: #{gat_classifier_forward.4} parent=0 // pred_fallthru
    _
  // Predicated region
  $region18: #{gat_classifier_forward.4} parent=0 // pred_check
    _
  $region19: #{gat_classifier_forward.4} parent=0 // pred_check_branch
    %23 = sbr.rel (0) target = $region21
  $region20: #{gat_classifier_forward.4} parent=0 // pred_region
    _
  $region21: #{gat_classifier_forward.4} parent=0 // pred_fallthru
    _
  // Predicated region
  $region22: #{gat_classifier_forward.4} parent=0 // pred_check
    _
  $region23: #{gat_classifier_forward.4} parent=0 // pred_check_branch
    %25 = sbr.rel (0) target = $region25
  $region24: #{gat_classifier_forward.4} parent=0 // pred_region
    _
  $region25: #{gat_classifier_forward.4} parent=0 // pred_fallthru
    _
  // Predicated region
  $region26: #{gat_classifier_forward.4} parent=0 // pred_check
    _
  $region27: #{gat_classifier_forward.4} parent=0 // pred_check_branch
    %27 = sbr.rel (0) target = $region29
  $region28: #{gat_classifier_forward.4} parent=0 // pred_region
    _
  $region29: #{gat_classifier_forward.4} parent=0 // pred_fallthru
    _
  %p29 = scmp.eq.s32.totalorder 0, 0
  // Predicated region
  $region30: #{gat_classifier_forward.4} parent=0 // pred_check
    %p30 = pneg %p29
  $region31: #{gat_classifier_forward.4} parent=0 // pred_check_branch
    %32 = sbr.rel (%p30) target = $region33
  $region32: #{gat_classifier_forward.4} parent=0 // pred_region
    %vm33 = vcmask 31744
    %34 = vst.msk [vmem:[#allocation2] sm:$0xff] %vm33, -1e+30
    %35 = vst.msk [vmem:[#allocation2 + $0x8] sm:$0xff] %vm33, -1e+30
    %36 = vst.msk [vmem:[#allocation2 + $0x10] sm:$0xff] %vm33, -1e+30
    %37 = vst.msk [vmem:[#allocation2 + $0x18] sm:$0xff] %vm33, -1e+30
    %38 = vst.msk [vmem:[#allocation3] sm:$0xff] %vm33, 0.0
    %39 = vst.msk [vmem:[#allocation3 + $0x8] sm:$0xff] %vm33, 0.0
    %40 = vst.msk [vmem:[#allocation3 + $0x10] sm:$0xff] %vm33, 0.0
    %41 = vst.msk [vmem:[#allocation3 + $0x18] sm:$0xff] %vm33, 0.0
    %42 = vst [vmem:[#allocation4] sm:$0xff] 0.0
    %43 = vst [vmem:[#allocation4 + $0x8] sm:$0xff] 0.0
    %44 = vst [vmem:[#allocation4 + $0x10] sm:$0xff] 0.0
    %45 = vst [vmem:[#allocation4 + $0x18] sm:$0xff] 0.0
  $region33: #{gat_classifier_forward.4} parent=0 // pred_fallthru
    _
  %s46 = sadd.s32 0, 0
  %s47 = smul.u32 %s46, 128
  %s48 = sadd.s32 %s47, 0
  %s49 = sld [smem:[#allocation6 + %s48]]
  %p50 = scmp.gt.s32.totalorder %s49, 0
  // Predicated region
  $region34: #{gat_classifier_forward.4} parent=0 // pred_check
    %p51 = pneg %p50
  $region35: #{gat_classifier_forward.4} parent=0 // pred_check_branch
    %53 = sbr.rel (%p51) target = $region37
  $region36: #{gat_classifier_forward.4} parent=0 // pred_region
    %v54 = vld [vmem:[%s4] sm:$0x3]
    %v55 = vld [vmem:[%s4 + $0x2] sm:$0x3]
    %v56 = vld [vmem:[%s4 + $0x4] sm:$0x3]
    %v57 = vld [vmem:[%s4 + $0x6] sm:$0x3]
    %v58 = vunpack.c.0.s8 %v54
    %v59 = vunpack.c.0.s8 %v55
    %v60 = vunpack.c.0.s8 %v56
    %v61 = vunpack.c.0.s8 %v57
    %v62 = vcvt.s32.f32 %v58
    %v63 = vcvt.s32.f32 %v59
    %v64 = vcvt.s32.f32 %v60
    %v65 = vcvt.s32.f32 %v61
    %vm66 = vcmp.gt.f32.partialorder %v62, 0.0
    %vm67 = vcmp.gt.f32.partialorder %v63, 0.0
    %vm68 = vcmp.gt.f32.partialorder %v64, 0.0
    %vm69 = vcmp.gt.f32.partialorder %v65, 0.0
    %v70 = vpack.c.bf16 %v62, %v62
    %v71 = vpack.c.bf16 %v63, %v63
    %v72 = vpack.c.bf16 %v64, %v64
    %v73 = vpack.c.bf16 %v65, %v65
    %v74 = vld [vmem:[%s1] sm:$0xff]
    %v75 = vld [vmem:[%s1 + $0x8] sm:$0xff]
    %v76 = vld [vmem:[%s1 + $0x10] sm:$0xff]
    %v77 = vld [vmem:[%s1 + $0x18] sm:$0xff]
    %v78 = vld [vmem:[%s2] sm:$0xf]
    %v79 = vld [vmem:[%s3] sm:$0xf]
    %v80 = vld [vmem:[%s3 + $0x4] sm:$0xf]
    %v81 = vld [vmem:[%s3 + $0x8] sm:$0xf]
    %v82 = vld [vmem:[%s3 + $0xc] sm:$0xf]
    %v83 = vld [vmem:[#allocation2] sm:$0xff]
    %v84 = vld [vmem:[#allocation2 + $0x8] sm:$0xff]
    %v85 = vld [vmem:[#allocation2 + $0x10] sm:$0xff]
    %v86 = vld [vmem:[#allocation2 + $0x18] sm:$0xff]
    %v87 = vld [vmem:[#allocation3] sm:$0xff]
    %v88 = vld [vmem:[#allocation3 + $0x8] sm:$0xff]
    %v89 = vld [vmem:[#allocation3 + $0x10] sm:$0xff]
    %v90 = vld [vmem:[#allocation3 + $0x18] sm:$0xff]
    %92 = vset.pattern.permute.xlu0 0
    %93 = vperm.xlu0 %92, %v74
    %v94 = vpop.permute.xlu0 %93
    %97 = vset.pattern.permute.xlu0 0
    %98 = vperm.xlu0 %97, %v75
    %v99 = vpop.permute.xlu0 %98
    %102 = vset.pattern.permute.xlu0 0
    %103 = vperm.xlu0 %102, %v76
    %v104 = vpop.permute.xlu0 %103
    %107 = vset.pattern.permute.xlu0 0
    %108 = vperm.xlu0 %107, %v77
    %v109 = vpop.permute.xlu0 %108
    %v111 = vperm.slane %v78, 0
    %v112 = vadd.f32 %v94, %v111
    %v113 = vadd.f32 %v99, %v111
    %v114 = vadd.f32 %v104, %v111
    %v115 = vadd.f32 %v109, %v111
    %vm116 = vcmp.gt.f32.partialorder %v112, 0.0
    %vm117 = vcmp.gt.f32.partialorder %v113, 0.0
    %vm118 = vcmp.gt.f32.partialorder %v114, 0.0
    %vm119 = vcmp.gt.f32.partialorder %v115, 0.0
    %v120 = vmul.f32 %v112, 0.2
    %v121 = vmul.f32 %v113, 0.2
    %v122 = vmul.f32 %v114, 0.2
    %v123 = vmul.f32 %v115, 0.2
    %v124 = vsel %vm116, %v112, %v120
    %v125 = vsel %vm117, %v113, %v121
    %v126 = vsel %vm118, %v114, %v122
    %v127 = vsel %vm119, %v115, %v123
    %v128 = vsel %vm66, %v124, -1e+30
    %v129 = vsel %vm67, %v125, -1e+30
    %v130 = vsel %vm68, %v126, -1e+30
    %v131 = vsel %vm69, %v127, -1e+30
    %vm132 = vcmask 261120
    %v133 = vsel %vm132, %v128, -inf
    %134 = vmax.xlane.f32.xlu0 %v133
    %v135 = vpop.xlane.xlu0 %134
    %v136 = vsel %vm132, %v129, -inf
    %137 = vmax.xlane.f32.xlu0 %v136
    %v138 = vpop.xlane.xlu0 %137
    %v139 = vsel %vm132, %v130, -inf
    %140 = vmax.xlane.f32.xlu0 %v139
    %v141 = vpop.xlane.xlu0 %140
    %v142 = vsel %vm132, %v131, -inf
    %143 = vmax.xlane.f32.xlu0 %v142
    %v144 = vpop.xlane.xlu0 %143
    %v145 = vmax.f32 %v83, %v135
    %v146 = vmax.f32 %v84, %v138
    %v147 = vmax.f32 %v85, %v141
    %v148 = vmax.f32 %v86, %v144
    %v149 = vsub.f32 %v83, %v145
    %v150 = vsub.f32 %v84, %v146
    %v151 = vsub.f32 %v85, %v147
    %v152 = vsub.f32 %v86, %v148
    %v153 = vmul.f32 %v149, 1.442695
    %v154 = vpow.pop %v153
    %v155 = vmul.f32 %v150, 1.442695
    %v156 = vpow.pop %v155
    %v157 = vmul.f32 %v151, 1.442695
    %v158 = vpow.pop %v157
    %v159 = vmul.f32 %v152, 1.442695
    %v160 = vpow.pop %v159
    %162 = vset.pattern.permute.xlu0 0
    %163 = vperm.xlu0 %162, %v145
    %v164 = vpop.permute.xlu0 %163
    %167 = vset.pattern.permute.xlu0 0
    %168 = vperm.xlu0 %167, %v146
    %v169 = vpop.permute.xlu0 %168
    %172 = vset.pattern.permute.xlu0 0
    %173 = vperm.xlu0 %172, %v147
    %v174 = vpop.permute.xlu0 %173
    %177 = vset.pattern.permute.xlu0 0
    %178 = vperm.xlu0 %177, %v148
    %v179 = vpop.permute.xlu0 %178
    %v181 = vsub.f32 %v128, %v164
    %v182 = vsub.f32 %v129, %v169
    %v183 = vsub.f32 %v130, %v174
    %v184 = vsub.f32 %v131, %v179
    %v185 = vpack.c.bf16 %v181, %v181
    %v186 = vpack.c.bf16 %v182, %v182
    %v187 = vpack.c.bf16 %v183, %v183
    %v188 = vpack.c.bf16 %v184, %v184
    %v189 = vunpack.c.l.bf16 %v185
    %v190 = vunpack.c.l.bf16 %v186
    %v191 = vunpack.c.l.bf16 %v187
    %v192 = vunpack.c.l.bf16 %v188
    %v193 = vmul.f32 %v189, 1.442695
    %v194 = vpow.pop %v193
    %v195 = vmul.f32 %v190, 1.442695
    %v196 = vpow.pop %v195
    %v197 = vmul.f32 %v191, 1.442695
    %v198 = vpow.pop %v197
    %v199 = vmul.f32 %v192, 1.442695
    %v200 = vpow.pop %v199
    %v201 = vpack.c.bf16 %v194, %v194
    %v202 = vpack.c.bf16 %v196, %v196
    %v203 = vpack.c.bf16 %v198, %v198
    %v204 = vpack.c.bf16 %v200, %v200
    %v205 = vunpack.c.l.bf16 %v201
    %v206 = vunpack.c.l.bf16 %v202
    %v207 = vunpack.c.l.bf16 %v203
    %v208 = vunpack.c.l.bf16 %v204
    %v209 = vunpack.c.l.bf16 %v70
    %v210 = vunpack.c.l.bf16 %v71
    %v211 = vunpack.c.l.bf16 %v72
    %v212 = vunpack.c.l.bf16 %v73
    %v213 = vmul.f32 %v205, %v209
    %v214 = vmul.f32 %v206, %v210
    %v215 = vmul.f32 %v207, %v211
    %v216 = vmul.f32 %v208, %v212
    %v217 = vpack.c.bf16 %v214, %v213
    %v218 = vpack.c.bf16 %v216, %v215
    %v219 = vunpack.c.l.bf16 %v217
    %v220 = vunpack.c.h.bf16 %v217
    %v221 = vunpack.c.l.bf16 %v218
    %v222 = vunpack.c.h.bf16 %v218
    %v223 = vsel %vm132, %v219, 0.0
    %224 = vadd.xlane.f32.xlu0 %v223
    %v225 = vpop.xlane.xlu0 %224
    %v226 = vsel %vm132, %v220, 0.0
    %227 = vadd.xlane.f32.xlu0 %v226
    %v228 = vpop.xlane.xlu0 %227
    %v229 = vsel %vm132, %v221, 0.0
    %230 = vadd.xlane.f32.xlu0 %v229
    %v231 = vpop.xlane.xlu0 %230
    %v232 = vsel %vm132, %v222, 0.0
    %233 = vadd.xlane.f32.xlu0 %v232
    %v234 = vpop.xlane.xlu0 %233
    %v235 = vmul.f32 %v154, %v87
    %v236 = vmul.f32 %v156, %v88
    %v237 = vmul.f32 %v158, %v89
    %v238 = vmul.f32 %v160, %v90
    %v239 = vadd.f32 %v235, %v225
    %v240 = vadd.f32 %v236, %v228
    %v241 = vadd.f32 %v237, %v231
    %v242 = vadd.f32 %v238, %v234
    %v247 = vunpack.c.l.b16 %v79
    %v248 = vunpack.c.l.b16 %v80
    %v249 = vunpack.c.l.b16 %v81
    %v250 = vunpack.c.l.b16 %v82
    %v251 = vpack.c.b16 %v248, %v247
    %v252 = vpack.c.b16 %v250, %v249
    %v256 = vsel %vm132, %v217, 0
    %v259 = vsel %vm132, %v218, 0
    %261 = vmatpush.bf16.msra.mxu0 0
    %262 = vmatpush.bf16.msra.mxu0 0
    %263 = vmatpush.bf16.msra.mxu0 0
    %264 = vmatpush.bf16.msra.mxu0 0
    %265 = vmatpush.bf16.msra.mxu0 0
    %266 = vmatpush.bf16.msra.mxu0 0
    %267 = vmatpush.bf16.msra.mxu0 %v252
    %268 = vmatpush.bf16.msra.mxu0 %v251
    %269 = vmatmul.bf16.gmra.mxu0 %v256
    %v270 = vpop.f32.mrf.mxu0
    %v271 = vadd.f32 0.0, %v270
    %v272 = vpop.f32.mrf.mxu0
    %v273 = vadd.f32 0.0, %v272
    %274 = vmatmul.bf16.gmra.mxu0 %v259
    %v275 = vpop.f32.mrf.mxu0
    %v276 = vadd.f32 0.0, %v275
    %v277 = vpop.f32.mrf.mxu0
    %v278 = vadd.f32 0.0, %v277
    %279 = vdwg.mxu0
    %280 = vset.pattern.permute.xlu0 1
    %281 = vperm.xlu0 %280, %v74
    %v282 = vpop.permute.xlu0 %281
    %284 = vset.pattern.permute.xlu0 1
    %285 = vperm.xlu0 %284, %v75
    %v286 = vpop.permute.xlu0 %285
    %288 = vset.pattern.permute.xlu0 1
    %289 = vperm.xlu0 %288, %v76
    %v290 = vpop.permute.xlu0 %289
    %292 = vset.pattern.permute.xlu0 1
    %293 = vperm.xlu0 %292, %v77
    %v294 = vpop.permute.xlu0 %293
    %v296 = vperm.slane %v78, 1
    %v297 = vadd.f32 %v282, %v296
    %v298 = vadd.f32 %v286, %v296
    %v299 = vadd.f32 %v290, %v296
    %v300 = vadd.f32 %v294, %v296
    %vm301 = vcmp.gt.f32.partialorder %v297, 0.0
    %vm302 = vcmp.gt.f32.partialorder %v298, 0.0
    %vm303 = vcmp.gt.f32.partialorder %v299, 0.0
    %vm304 = vcmp.gt.f32.partialorder %v300, 0.0
    %v305 = vmul.f32 %v297, 0.2
    %v306 = vmul.f32 %v298, 0.2
    %v307 = vmul.f32 %v299, 0.2
    %v308 = vmul.f32 %v300, 0.2
    %v309 = vsel %vm301, %v297, %v305
    %v310 = vsel %vm302, %v298, %v306
    %v311 = vsel %vm303, %v299, %v307
    %v312 = vsel %vm304, %v300, %v308
    %v313 = vsel %vm66, %v309, -1e+30
    %v314 = vsel %vm67, %v310, -1e+30
    %v315 = vsel %vm68, %v311, -1e+30
    %v316 = vsel %vm69, %v312, -1e+30
    %v317 = vsel %vm132, %v313, -inf
    %318 = vmax.xlane.f32.xlu0 %v317
    %v319 = vpop.xlane.xlu0 %318
    %v320 = vsel %vm132, %v314, -inf
    %321 = vmax.xlane.f32.xlu0 %v320
    %v322 = vpop.xlane.xlu0 %321
    %v323 = vsel %vm132, %v315, -inf
    %324 = vmax.xlane.f32.xlu0 %v323
    %v325 = vpop.xlane.xlu0 %324
    %v326 = vsel %vm132, %v316, -inf
    %327 = vmax.xlane.f32.xlu0 %v326
    %v328 = vpop.xlane.xlu0 %327
    %v329 = vmax.f32 %v83, %v319
    %v330 = vmax.f32 %v84, %v322
    %v331 = vmax.f32 %v85, %v325
    %v332 = vmax.f32 %v86, %v328
    %v333 = vsub.f32 %v83, %v329
    %v334 = vsub.f32 %v84, %v330
    %v335 = vsub.f32 %v85, %v331
    %v336 = vsub.f32 %v86, %v332
    %v337 = vmul.f32 %v333, 1.442695
    %v338 = vpow.pop %v337
    %v339 = vmul.f32 %v334, 1.442695
    %v340 = vpow.pop %v339
    %v341 = vmul.f32 %v335, 1.442695
    %v342 = vpow.pop %v341
    %v343 = vmul.f32 %v336, 1.442695
    %v344 = vpow.pop %v343
    %346 = vset.pattern.permute.xlu0 1
    %347 = vperm.xlu0 %346, %v329
    %v348 = vpop.permute.xlu0 %347
    %351 = vset.pattern.permute.xlu0 1
    %352 = vperm.xlu0 %351, %v330
    %v353 = vpop.permute.xlu0 %352
    %356 = vset.pattern.permute.xlu0 1
    %357 = vperm.xlu0 %356, %v331
    %v358 = vpop.permute.xlu0 %357
    %361 = vset.pattern.permute.xlu0 1
    %362 = vperm.xlu0 %361, %v332
    %v363 = vpop.permute.xlu0 %362
    %v365 = vsub.f32 %v313, %v348
    %v366 = vsub.f32 %v314, %v353
    %v367 = vsub.f32 %v315, %v358
    %v368 = vsub.f32 %v316, %v363
    %v369 = vpack.c.bf16 %v365, %v365
    %v370 = vpack.c.bf16 %v366, %v366
    %v371 = vpack.c.bf16 %v367, %v367
    %v372 = vpack.c.bf16 %v368, %v368
    %v373 = vunpack.c.l.bf16 %v369
    %v374 = vunpack.c.l.bf16 %v370
    %v375 = vunpack.c.l.bf16 %v371
    %v376 = vunpack.c.l.bf16 %v372
    %v377 = vmul.f32 %v373, 1.442695
    %v378 = vpow.pop %v377
    %v379 = vmul.f32 %v374, 1.442695
    %v380 = vpow.pop %v379
    %v381 = vmul.f32 %v375, 1.442695
    %v382 = vpow.pop %v381
    %v383 = vmul.f32 %v376, 1.442695
    %v384 = vpow.pop %v383
    %v385 = vpack.c.bf16 %v378, %v378
    %v386 = vpack.c.bf16 %v380, %v380
    %v387 = vpack.c.bf16 %v382, %v382
    %v388 = vpack.c.bf16 %v384, %v384
    %v389 = vunpack.c.l.bf16 %v385
    %v390 = vunpack.c.l.bf16 %v386
    %v391 = vunpack.c.l.bf16 %v387
    %v392 = vunpack.c.l.bf16 %v388
    %v393 = vmul.f32 %v389, %v209
    %v394 = vmul.f32 %v390, %v210
    %v395 = vmul.f32 %v391, %v211
    %v396 = vmul.f32 %v392, %v212
    %v397 = vpack.c.bf16 %v394, %v393
    %v398 = vpack.c.bf16 %v396, %v395
    %v399 = vunpack.c.l.bf16 %v397
    %v400 = vunpack.c.h.bf16 %v397
    %v401 = vunpack.c.l.bf16 %v398
    %v402 = vunpack.c.h.bf16 %v398
    %v403 = vsel %vm132, %v399, 0.0
    %404 = vadd.xlane.f32.xlu0 %v403
    %v405 = vpop.xlane.xlu0 %404
    %v406 = vsel %vm132, %v400, 0.0
    %407 = vadd.xlane.f32.xlu0 %v406
    %v408 = vpop.xlane.xlu0 %407
    %v409 = vsel %vm132, %v401, 0.0
    %410 = vadd.xlane.f32.xlu0 %v409
    %v411 = vpop.xlane.xlu0 %410
    %v412 = vsel %vm132, %v402, 0.0
    %413 = vadd.xlane.f32.xlu0 %v412
    %v414 = vpop.xlane.xlu0 %413
    %v415 = vmul.f32 %v338, %v87
    %v416 = vmul.f32 %v340, %v88
    %v417 = vmul.f32 %v342, %v89
    %v418 = vmul.f32 %v344, %v90
    %v419 = vadd.f32 %v415, %v405
    %v420 = vadd.f32 %v416, %v408
    %v421 = vadd.f32 %v417, %v411
    %v422 = vadd.f32 %v418, %v414
    %423 = vrot.lane.b32.xlu0 %v251, 96
    %v424 = vpop.permute.xlu0 %423
    %425 = vrot.lane.b32.xlu0 %v252, 96
    %v426 = vpop.permute.xlu0 %425
    %v430 = vsel %vm132, %v397, 0
    %v433 = vsel %vm132, %v398, 0
    %435 = vmatpush.bf16.msra.mxu0 0
    %436 = vmatpush.bf16.msra.mxu0 0
    %437 = vmatpush.bf16.msra.mxu0 0
    %438 = vmatpush.bf16.msra.mxu0 0
    %439 = vmatpush.bf16.msra.mxu0 0
    %440 = vmatpush.bf16.msra.mxu0 0
    %441 = vmatpush.bf16.msra.mxu0 %v426
    %442 = vmatpush.bf16.msra.mxu0 %v424
    %443 = vmatmul.bf16.gmra.mxu0 %v430
    %v444 = vpop.f32.mrf.mxu0
    %v445 = vadd.f32 0.0, %v444
    %v446 = vpop.f32.mrf.mxu0
    %v447 = vadd.f32 0.0, %v446
    %448 = vmatmul.bf16.gmra.mxu0 %v433
    %v449 = vpop.f32.mrf.mxu0
    %v450 = vadd.f32 0.0, %v449
    %v451 = vpop.f32.mrf.mxu0
    %v452 = vadd.f32 0.0, %v451
    %453 = vdwg.mxu0
    %454 = vset.pattern.permute.xlu0 2
    %455 = vperm.xlu0 %454, %v74
    %v456 = vpop.permute.xlu0 %455
    %458 = vset.pattern.permute.xlu0 2
    %459 = vperm.xlu0 %458, %v75
    %v460 = vpop.permute.xlu0 %459
    %462 = vset.pattern.permute.xlu0 2
    %463 = vperm.xlu0 %462, %v76
    %v464 = vpop.permute.xlu0 %463
    %466 = vset.pattern.permute.xlu0 2
    %467 = vperm.xlu0 %466, %v77
    %v468 = vpop.permute.xlu0 %467
    %v470 = vperm.slane %v78, 2
    %v471 = vadd.f32 %v456, %v470
    %v472 = vadd.f32 %v460, %v470
    %v473 = vadd.f32 %v464, %v470
    %v474 = vadd.f32 %v468, %v470
    %vm475 = vcmp.gt.f32.partialorder %v471, 0.0
    %vm476 = vcmp.gt.f32.partialorder %v472, 0.0
    %vm477 = vcmp.gt.f32.partialorder %v473, 0.0
    %vm478 = vcmp.gt.f32.partialorder %v474, 0.0
    %v479 = vmul.f32 %v471, 0.2
    %v480 = vmul.f32 %v472, 0.2
    %v481 = vmul.f32 %v473, 0.2
    %v482 = vmul.f32 %v474, 0.2
    %v483 = vsel %vm475, %v471, %v479
    %v484 = vsel %vm476, %v472, %v480
    %v485 = vsel %vm477, %v473, %v481
    %v486 = vsel %vm478, %v474, %v482
    %v487 = vsel %vm66, %v483, -1e+30
    %v488 = vsel %vm67, %v484, -1e+30
    %v489 = vsel %vm68, %v485, -1e+30
    %v490 = vsel %vm69, %v486, -1e+30
    %v491 = vsel %vm132, %v487, -inf
    %492 = vmax.xlane.f32.xlu0 %v491
    %v493 = vpop.xlane.xlu0 %492
    %v494 = vsel %vm132, %v488, -inf
    %495 = vmax.xlane.f32.xlu0 %v494
    %v496 = vpop.xlane.xlu0 %495
    %v497 = vsel %vm132, %v489, -inf
    %498 = vmax.xlane.f32.xlu0 %v497
    %v499 = vpop.xlane.xlu0 %498
    %v500 = vsel %vm132, %v490, -inf
    %501 = vmax.xlane.f32.xlu0 %v500
    %v502 = vpop.xlane.xlu0 %501
    %v503 = vmax.f32 %v83, %v493
    %v504 = vmax.f32 %v84, %v496
    %v505 = vmax.f32 %v85, %v499
    %v506 = vmax.f32 %v86, %v502
    %v507 = vsub.f32 %v83, %v503
    %v508 = vsub.f32 %v84, %v504
    %v509 = vsub.f32 %v85, %v505
    %v510 = vsub.f32 %v86, %v506
    %v511 = vmul.f32 %v507, 1.442695
    %v512 = vpow.pop %v511
    %v513 = vmul.f32 %v508, 1.442695
    %v514 = vpow.pop %v513
    %v515 = vmul.f32 %v509, 1.442695
    %v516 = vpow.pop %v515
    %v517 = vmul.f32 %v510, 1.442695
    %v518 = vpow.pop %v517
    %520 = vset.pattern.permute.xlu0 2
    %521 = vperm.xlu0 %520, %v503
    %v522 = vpop.permute.xlu0 %521
    %525 = vset.pattern.permute.xlu0 2
    %526 = vperm.xlu0 %525, %v504
    %v527 = vpop.permute.xlu0 %526
    %530 = vset.pattern.permute.xlu0 2
    %531 = vperm.xlu0 %530, %v505
    %v532 = vpop.permute.xlu0 %531
    %535 = vset.pattern.permute.xlu0 2
    %536 = vperm.xlu0 %535, %v506
    %v537 = vpop.permute.xlu0 %536
    %v539 = vsub.f32 %v487, %v522
    %v540 = vsub.f32 %v488, %v527
    %v541 = vsub.f32 %v489, %v532
    %v542 = vsub.f32 %v490, %v537
    %v543 = vpack.c.bf16 %v539, %v539
    %v544 = vpack.c.bf16 %v540, %v540
    %v545 = vpack.c.bf16 %v541, %v541
    %v546 = vpack.c.bf16 %v542, %v542
    %v547 = vunpack.c.l.bf16 %v543
    %v548 = vunpack.c.l.bf16 %v544
    %v549 = vunpack.c.l.bf16 %v545
    %v550 = vunpack.c.l.bf16 %v546
    %v551 = vmul.f32 %v547, 1.442695
    %v552 = vpow.pop %v551
    %v553 = vmul.f32 %v548, 1.442695
    %v554 = vpow.pop %v553
    %v555 = vmul.f32 %v549, 1.442695
    %v556 = vpow.pop %v555
    %v557 = vmul.f32 %v550, 1.442695
    %v558 = vpow.pop %v557
    %v559 = vpack.c.bf16 %v552, %v552
    %v560 = vpack.c.bf16 %v554, %v554
    %v561 = vpack.c.bf16 %v556, %v556
    %v562 = vpack.c.bf16 %v558, %v558
    %v563 = vunpack.c.l.bf16 %v559
    %v564 = vunpack.c.l.bf16 %v560
    %v565 = vunpack.c.l.bf16 %v561
    %v566 = vunpack.c.l.bf16 %v562
    %v567 = vmul.f32 %v563, %v209
    %v568 = vmul.f32 %v564, %v210
    %v569 = vmul.f32 %v565, %v211
    %v570 = vmul.f32 %v566, %v212
    %v571 = vpack.c.bf16 %v568, %v567
    %v572 = vpack.c.bf16 %v570, %v569
    %v573 = vunpack.c.l.bf16 %v571
    %v574 = vunpack.c.h.bf16 %v571
    %v575 = vunpack.c.l.bf16 %v572
    %v576 = vunpack.c.h.bf16 %v572
    %v577 = vsel %vm132, %v573, 0.0
    %578 = vadd.xlane.f32.xlu0 %v577
    %v579 = vpop.xlane.xlu0 %578
    %v580 = vsel %vm132, %v574, 0.0
    %581 = vadd.xlane.f32.xlu0 %v580
    %v582 = vpop.xlane.xlu0 %581
    %v583 = vsel %vm132, %v575, 0.0
    %584 = vadd.xlane.f32.xlu0 %v583
    %v585 = vpop.xlane.xlu0 %584
    %v586 = vsel %vm132, %v576, 0.0
    %587 = vadd.xlane.f32.xlu0 %v586
    %v588 = vpop.xlane.xlu0 %587
    %v589 = vmul.f32 %v512, %v87
    %v590 = vmul.f32 %v514, %v88
    %v591 = vmul.f32 %v516, %v89
    %v592 = vmul.f32 %v518, %v90
    %v593 = vadd.f32 %v589, %v579
    %v594 = vadd.f32 %v590, %v582
    %v595 = vadd.f32 %v591, %v585
    %v596 = vadd.f32 %v592, %v588
    %597 = vrot.lane.b32.xlu0 %v251, 64
    %v598 = vpop.permute.xlu0 %597
    %599 = vrot.lane.b32.xlu0 %v252, 64
    %v600 = vpop.permute.xlu0 %599
    %v604 = vsel %vm132, %v571, 0
    %v607 = vsel %vm132, %v572, 0
    %609 = vmatpush.bf16.msra.mxu0 0
    %610 = vmatpush.bf16.msra.mxu0 0
    %611 = vmatpush.bf16.msra.mxu0 0
    %612 = vmatpush.bf16.msra.mxu0 0
    %613 = vmatpush.bf16.msra.mxu0 0
    %614 = vmatpush.bf16.msra.mxu0 0
    %615 = vmatpush.bf16.msra.mxu0 %v600
    %616 = vmatpush.bf16.msra.mxu0 %v598
    %617 = vmatmul.bf16.gmra.mxu0 %v604
    %v618 = vpop.f32.mrf.mxu0
    %v619 = vadd.f32 0.0, %v618
    %v620 = vpop.f32.mrf.mxu0
    %v621 = vadd.f32 0.0, %v620
    %622 = vmatmul.bf16.gmra.mxu0 %v607
    %v623 = vpop.f32.mrf.mxu0
    %v624 = vadd.f32 0.0, %v623
    %v625 = vpop.f32.mrf.mxu0
    %v626 = vadd.f32 0.0, %v625
    %627 = vdwg.mxu0
    %628 = vset.pattern.permute.xlu0 3
    %629 = vperm.xlu0 %628, %v74
    %v630 = vpop.permute.xlu0 %629
    %632 = vset.pattern.permute.xlu0 3
    %633 = vperm.xlu0 %632, %v75
    %v634 = vpop.permute.xlu0 %633
    %636 = vset.pattern.permute.xlu0 3
    %637 = vperm.xlu0 %636, %v76
    %v638 = vpop.permute.xlu0 %637
    %640 = vset.pattern.permute.xlu0 3
    %641 = vperm.xlu0 %640, %v77
    %v642 = vpop.permute.xlu0 %641
    %v644 = vperm.slane %v78, 3
    %v645 = vadd.f32 %v630, %v644
    %v646 = vadd.f32 %v634, %v644
    %v647 = vadd.f32 %v638, %v644
    %v648 = vadd.f32 %v642, %v644
    %vm649 = vcmp.gt.f32.partialorder %v645, 0.0
    %vm650 = vcmp.gt.f32.partialorder %v646, 0.0
    %vm651 = vcmp.gt.f32.partialorder %v647, 0.0
    %vm652 = vcmp.gt.f32.partialorder %v648, 0.0
    %v653 = vmul.f32 %v645, 0.2
    %v654 = vmul.f32 %v646, 0.2
    %v655 = vmul.f32 %v647, 0.2
    %v656 = vmul.f32 %v648, 0.2
    %v657 = vsel %vm649, %v645, %v653
    %v658 = vsel %vm650, %v646, %v654
    %v659 = vsel %vm651, %v647, %v655
    %v660 = vsel %vm652, %v648, %v656
    %v661 = vsel %vm66, %v657, -1e+30
    %v662 = vsel %vm67, %v658, -1e+30
    %v663 = vsel %vm68, %v659, -1e+30
    %v664 = vsel %vm69, %v660, -1e+30
    %v665 = vsel %vm132, %v661, -inf
    %666 = vmax.xlane.f32.xlu0 %v665
    %v667 = vpop.xlane.xlu0 %666
    %v668 = vsel %vm132, %v662, -inf
    %669 = vmax.xlane.f32.xlu0 %v668
    %v670 = vpop.xlane.xlu0 %669
    %v671 = vsel %vm132, %v663, -inf
    %672 = vmax.xlane.f32.xlu0 %v671
    %v673 = vpop.xlane.xlu0 %672
    %v674 = vsel %vm132, %v664, -inf
    %675 = vmax.xlane.f32.xlu0 %v674
    %v676 = vpop.xlane.xlu0 %675
    %v677 = vmax.f32 %v83, %v667
    %v678 = vmax.f32 %v84, %v670
    %v679 = vmax.f32 %v85, %v673
    %v680 = vmax.f32 %v86, %v676
    %v681 = vsub.f32 %v83, %v677
    %v682 = vsub.f32 %v84, %v678
    %v683 = vsub.f32 %v85, %v679
    %v684 = vsub.f32 %v86, %v680
    %v685 = vmul.f32 %v681, 1.442695
    %v686 = vpow.pop %v685
    %v687 = vmul.f32 %v682, 1.442695
    %v688 = vpow.pop %v687
    %v689 = vmul.f32 %v683, 1.442695
    %v690 = vpow.pop %v689
    %v691 = vmul.f32 %v684, 1.442695
    %v692 = vpow.pop %v691
    %694 = vset.pattern.permute.xlu0 3
    %695 = vperm.xlu0 %694, %v677
    %v696 = vpop.permute.xlu0 %695
    %699 = vset.pattern.permute.xlu0 3
    %700 = vperm.xlu0 %699, %v678
    %v701 = vpop.permute.xlu0 %700
    %704 = vset.pattern.permute.xlu0 3
    %705 = vperm.xlu0 %704, %v679
    %v706 = vpop.permute.xlu0 %705
    %709 = vset.pattern.permute.xlu0 3
    %710 = vperm.xlu0 %709, %v680
    %v711 = vpop.permute.xlu0 %710
    %v713 = vsub.f32 %v661, %v696
    %v714 = vsub.f32 %v662, %v701
    %v715 = vsub.f32 %v663, %v706
    %v716 = vsub.f32 %v664, %v711
    %v717 = vpack.c.bf16 %v713, %v713
    %v718 = vpack.c.bf16 %v714, %v714
    %v719 = vpack.c.bf16 %v715, %v715
    %v720 = vpack.c.bf16 %v716, %v716
    %v721 = vunpack.c.l.bf16 %v717
    %v722 = vunpack.c.l.bf16 %v718
    %v723 = vunpack.c.l.bf16 %v719
    %v724 = vunpack.c.l.bf16 %v720
    %v725 = vmul.f32 %v721, 1.442695
    %v726 = vpow.pop %v725
    %v727 = vmul.f32 %v722, 1.442695
    %v728 = vpow.pop %v727
    %v729 = vmul.f32 %v723, 1.442695
    %v730 = vpow.pop %v729
    %v731 = vmul.f32 %v724, 1.442695
    %v732 = vpow.pop %v731
    %v733 = vpack.c.bf16 %v726, %v726
    %v734 = vpack.c.bf16 %v728, %v728
    %v735 = vpack.c.bf16 %v730, %v730
    %v736 = vpack.c.bf16 %v732, %v732
    %v737 = vunpack.c.l.bf16 %v733
    %v738 = vunpack.c.l.bf16 %v734
    %v739 = vunpack.c.l.bf16 %v735
    %v740 = vunpack.c.l.bf16 %v736
    %v741 = vmul.f32 %v737, %v209
    %v742 = vmul.f32 %v738, %v210
    %v743 = vmul.f32 %v739, %v211
    %v744 = vmul.f32 %v740, %v212
    %v745 = vpack.c.bf16 %v742, %v741
    %v746 = vpack.c.bf16 %v744, %v743
    %v747 = vunpack.c.l.bf16 %v745
    %v748 = vunpack.c.h.bf16 %v745
    %v749 = vunpack.c.l.bf16 %v746
    %v750 = vunpack.c.h.bf16 %v746
    %v751 = vsel %vm132, %v747, 0.0
    %752 = vadd.xlane.f32.xlu0 %v751
    %v753 = vpop.xlane.xlu0 %752
    %v754 = vsel %vm132, %v748, 0.0
    %755 = vadd.xlane.f32.xlu0 %v754
    %v756 = vpop.xlane.xlu0 %755
    %v757 = vsel %vm132, %v749, 0.0
    %758 = vadd.xlane.f32.xlu0 %v757
    %v759 = vpop.xlane.xlu0 %758
    %v760 = vsel %vm132, %v750, 0.0
    %761 = vadd.xlane.f32.xlu0 %v760
    %v762 = vpop.xlane.xlu0 %761
    %v763 = vmul.f32 %v686, %v87
    %v764 = vmul.f32 %v688, %v88
    %v765 = vmul.f32 %v690, %v89
    %v766 = vmul.f32 %v692, %v90
    %v767 = vadd.f32 %v763, %v753
    %v768 = vadd.f32 %v764, %v756
    %v769 = vadd.f32 %v765, %v759
    %v770 = vadd.f32 %v766, %v762
    %771 = vrot.lane.b32.xlu0 %v251, 32
    %v772 = vpop.permute.xlu0 %771
    %773 = vrot.lane.b32.xlu0 %v252, 32
    %v774 = vpop.permute.xlu0 %773
    %v778 = vsel %vm132, %v745, 0
    %v781 = vsel %vm132, %v746, 0
    %783 = vmatpush.bf16.msra.mxu0 0
    %784 = vmatpush.bf16.msra.mxu0 0
    %785 = vmatpush.bf16.msra.mxu0 0
    %786 = vmatpush.bf16.msra.mxu0 0
    %787 = vmatpush.bf16.msra.mxu0 0
    %788 = vmatpush.bf16.msra.mxu0 0
    %789 = vmatpush.bf16.msra.mxu0 %v774
    %790 = vmatpush.bf16.msra.mxu0 %v772
    %791 = vmatmul.bf16.gmra.mxu0 %v778
    %v792 = vpop.f32.mrf.mxu0
    %v793 = vadd.f32 0.0, %v792
    %v794 = vpop.f32.mrf.mxu0
    %v795 = vadd.f32 0.0, %v794
    %796 = vmatmul.bf16.gmra.mxu0 %v781
    %v797 = vpop.f32.mrf.mxu0
    %v798 = vadd.f32 0.0, %v797
    %v799 = vpop.f32.mrf.mxu0
    %v800 = vadd.f32 0.0, %v799
    %801 = vdwg.mxu0
    %vm802 = vcmask 7168
    %v803 = vsel %vm802, %v145, %v329
    %v804 = vsel %vm802, %v146, %v330
    %v805 = vsel %vm802, %v147, %v331
    %v806 = vsel %vm802, %v148, %v332
    %vm807 = vcmask 15360
    %v808 = vsel %vm807, %v803, %v503
    %v809 = vsel %vm807, %v804, %v504
    %v810 = vsel %vm807, %v805, %v505
    %v811 = vsel %vm807, %v806, %v506
    %vm812 = vcmask 23552
    %v813 = vsel %vm812, %v808, %v677
    %v814 = vsel %vm812, %v809, %v678
    %v815 = vsel %vm812, %v810, %v679
    %v816 = vsel %vm812, %v811, %v680
    %vm817 = vcmask 31744
    %818 = vst.msk [vmem:[#allocation2] sm:$0xff] %vm817, %v813
    %819 = vst.msk [vmem:[#allocation2 + $0x8] sm:$0xff] %vm817, %v814
    %820 = vst.msk [vmem:[#allocation2 + $0x10] sm:$0xff] %vm817, %v815
    %821 = vst.msk [vmem:[#allocation2 + $0x18] sm:$0xff] %vm817, %v816
    %v822 = vsel %vm802, %v239, %v419
    %v823 = vsel %vm802, %v240, %v420
    %v824 = vsel %vm802, %v241, %v421
    %v825 = vsel %vm802, %v242, %v422
    %v826 = vsel %vm807, %v822, %v593
    %v827 = vsel %vm807, %v823, %v594
    %v828 = vsel %vm807, %v824, %v595
    %v829 = vsel %vm807, %v825, %v596
    %v830 = vsel %vm812, %v826, %v767
    %v831 = vsel %vm812, %v827, %v768
    %v832 = vsel %vm812, %v828, %v769
    %v833 = vsel %vm812, %v829, %v770
    %834 = vst.msk [vmem:[#allocation3] sm:$0xff] %vm817, %v830
    %835 = vst.msk [vmem:[#allocation3 + $0x8] sm:$0xff] %vm817, %v831
    %836 = vst.msk [vmem:[#allocation3 + $0x10] sm:$0xff] %vm817, %v832
    %837 = vst.msk [vmem:[#allocation3 + $0x18] sm:$0xff] %vm817, %v833
    %839 = vset.pattern.permute.xlu0 0
    %840 = vperm.xlu0 %839, %v154
    %v841 = vpop.permute.xlu0 %840
    %844 = vset.pattern.permute.xlu0 0
    %845 = vperm.xlu0 %844, %v156
    %v846 = vpop.permute.xlu0 %845
    %849 = vset.pattern.permute.xlu0 0
    %850 = vperm.xlu0 %849, %v158
    %v851 = vpop.permute.xlu0 %850
    %854 = vset.pattern.permute.xlu0 0
    %855 = vperm.xlu0 %854, %v160
    %v856 = vpop.permute.xlu0 %855
    %859 = vset.pattern.permute.xlu0 1
    %860 = vperm.xlu0 %859, %v338
    %v861 = vpop.permute.xlu0 %860
    %864 = vset.pattern.permute.xlu0 1
    %865 = vperm.xlu0 %864, %v340
    %v866 = vpop.permute.xlu0 %865
    %869 = vset.pattern.permute.xlu0 1
    %870 = vperm.xlu0 %869, %v342
    %v871 = vpop.permute.xlu0 %870
    %874 = vset.pattern.permute.xlu0 1
    %875 = vperm.xlu0 %874, %v344
    %v876 = vpop.permute.xlu0 %875
    %879 = vset.pattern.permute.xlu0 2
    %880 = vperm.xlu0 %879, %v512
    %v881 = vpop.permute.xlu0 %880
    %884 = vset.pattern.permute.xlu0 2
    %885 = vperm.xlu0 %884, %v514
    %v886 = vpop.permute.xlu0 %885
    %889 = vset.pattern.permute.xlu0 2
    %890 = vperm.xlu0 %889, %v516
    %v891 = vpop.permute.xlu0 %890
    %894 = vset.pattern.permute.xlu0 2
    %895 = vperm.xlu0 %894, %v518
    %v896 = vpop.permute.xlu0 %895
    %899 = vset.pattern.permute.xlu0 3
    %900 = vperm.xlu0 %899, %v686
    %v901 = vpop.permute.xlu0 %900
    %904 = vset.pattern.permute.xlu0 3
    %905 = vperm.xlu0 %904, %v688
    %v906 = vpop.permute.xlu0 %905
    %909 = vset.pattern.permute.xlu0 3
    %910 = vperm.xlu0 %909, %v690
    %v911 = vpop.permute.xlu0 %910
    %914 = vset.pattern.permute.xlu0 3
    %915 = vperm.xlu0 %914, %v692
    %v916 = vpop.permute.xlu0 %915
    %v918 = vsel %vm132, %v841, %v861
    %v919 = vsel %vm132, %v846, %v866
    %v920 = vsel %vm132, %v851, %v871
    %v921 = vsel %vm132, %v856, %v876
    %vm922 = vcmask 523264
    %v923 = vsel %vm922, %v918, %v881
    %v924 = vsel %vm922, %v919, %v886
    %v925 = vsel %vm922, %v920, %v891
    %v926 = vsel %vm922, %v921, %v896
    %vm927 = vcmask 785408
    %v928 = vsel %vm927, %v923, %v901
    %v929 = vsel %vm927, %v924, %v906
    %v930 = vsel %vm927, %v925, %v911
    %v931 = vsel %vm927, %v926, %v916
    %v932 = vld [vmem:[#allocation4] sm:$0xff]
    %v933 = vld [vmem:[#allocation4 + $0x8] sm:$0xff]
    %v934 = vld [vmem:[#allocation4 + $0x10] sm:$0xff]
    %v935 = vld [vmem:[#allocation4 + $0x18] sm:$0xff]
    %v936 = vmul.f32 %v928, %v932
    %v937 = vmul.f32 %v929, %v933
    %v938 = vmul.f32 %v930, %v934
    %v939 = vmul.f32 %v931, %v935
    %944 = vrot.lane.b32.xlu0 %v445, 32
    %v945 = vpop.permute.xlu0 %944
    %946 = vrot.lane.b32.xlu0 %v447, 32
    %v947 = vpop.permute.xlu0 %946
    %948 = vrot.lane.b32.xlu0 %v450, 32
    %v949 = vpop.permute.xlu0 %948
    %950 = vrot.lane.b32.xlu0 %v452, 32
    %v951 = vpop.permute.xlu0 %950
    %960 = vrot.lane.b32.xlu0 %v619, 64
    %v961 = vpop.permute.xlu0 %960
    %962 = vrot.lane.b32.xlu0 %v621, 64
    %v963 = vpop.permute.xlu0 %962
    %964 = vrot.lane.b32.xlu0 %v624, 64
    %v965 = vpop.permute.xlu0 %964
    %966 = vrot.lane.b32.xlu0 %v626, 64
    %v967 = vpop.permute.xlu0 %966
    %976 = vrot.lane.b32.xlu0 %v793, 96
    %v977 = vpop.permute.xlu0 %976
    %978 = vrot.lane.b32.xlu0 %v795, 96
    %v979 = vpop.permute.xlu0 %978
    %980 = vrot.lane.b32.xlu0 %v798, 96
    %v981 = vpop.permute.xlu0 %980
    %982 = vrot.lane.b32.xlu0 %v800, 96
    %v983 = vpop.permute.xlu0 %982
    %v988 = vsel %vm132, %v271, %v945
    %v989 = vsel %vm132, %v273, %v947
    %v990 = vsel %vm132, %v276, %v949
    %v991 = vsel %vm132, %v278, %v951
    %v992 = vsel %vm922, %v988, %v961
    %v993 = vsel %vm922, %v989, %v963
    %v994 = vsel %vm922, %v990, %v965
    %v995 = vsel %vm922, %v991, %v967
    %v996 = vsel %vm927, %v992, %v977
    %v997 = vsel %vm927, %v993, %v979
    %v998 = vsel %vm927, %v994, %v981
    %v999 = vsel %vm927, %v995, %v983
    %v1000 = vadd.f32 %v936, %v996
    %v1001 = vadd.f32 %v937, %v997
    %v1002 = vadd.f32 %v938, %v998
    %v1003 = vadd.f32 %v939, %v999
    %1004 = vst [vmem:[#allocation4] sm:$0xff] %v1000
    %1005 = vst [vmem:[#allocation4 + $0x8] sm:$0xff] %v1001
    %1006 = vst [vmem:[#allocation4 + $0x10] sm:$0xff] %v1002
    %1007 = vst [vmem:[#allocation4 + $0x18] sm:$0xff] %v1003
  $region37: #{gat_classifier_forward.4} parent=0 // pred_fallthru
    _
  // Predicated region
  $region38: #{gat_classifier_forward.4} parent=0 // pred_check
    %p1008 = pneg %p29
  $region39: #{gat_classifier_forward.4} parent=0 // pred_check_branch
    %1010 = sbr.rel (%p1008) target = $region41
  $region40: #{gat_classifier_forward.4} parent=0 // pred_region
    %v1011 = vld [vmem:[#allocation3] sm:$0xff]
    %v1012 = vld [vmem:[#allocation3 + $0x8] sm:$0xff]
    %v1013 = vld [vmem:[#allocation3 + $0x10] sm:$0xff]
    %v1014 = vld [vmem:[#allocation3 + $0x18] sm:$0xff]
    %v1015 = vmax.f32 %v1011, 1e-30
    %v1016 = vmax.f32 %v1012, 1e-30
    %v1017 = vmax.f32 %v1013, 1e-30
    %v1018 = vmax.f32 %v1014, 1e-30
    %v1019 = vrcp.pop %v1015
    %v1020 = vmul.f32 %v1015, %v1019
    %v1021 = vsub.f32 1.0, %v1020
    %v1022 = vmul.f32 %v1019, %v1021
    %v1023 = vadd.f32 %v1019, %v1022
    %vm1024 = vweird.f32 %v1015
    %vm1025 = vweird.f32 %v1019
    %vm1026 = vmor %vm1024, %vm1025
    %v1027 = vsel %vm1026, %v1019, %v1023
    %v1028 = vand.u32 2147483647, %v1015
    %vm1029 = vcmp.eq.f32.partialorder %v1028, 8.507059e+37
    %v1030 = vand.u32 %v1015, 2147483648
    %v1031 = vor.u32 1.1754944e-38, %v1030
    %v1032 = vsel %vm1029, %v1031, %v1027
    %v1033 = vrcp.pop %v1016
    %v1034 = vmul.f32 %v1016, %v1033
    %v1035 = vsub.f32 1.0, %v1034
    %v1036 = vmul.f32 %v1033, %v1035
    %v1037 = vadd.f32 %v1033, %v1036
    %vm1038 = vweird.f32 %v1016
    %vm1039 = vweird.f32 %v1033
    %vm1040 = vmor %vm1038, %vm1039
    %v1041 = vsel %vm1040, %v1033, %v1037
    %v1042 = vand.u32 2147483647, %v1016
    %vm1043 = vcmp.eq.f32.partialorder %v1042, 8.507059e+37
    %v1044 = vand.u32 %v1016, 2147483648
    %v1045 = vor.u32 1.1754944e-38, %v1044
    %v1046 = vsel %vm1043, %v1045, %v1041
    %v1047 = vrcp.pop %v1017
    %v1048 = vmul.f32 %v1017, %v1047
    %v1049 = vsub.f32 1.0, %v1048
    %v1050 = vmul.f32 %v1047, %v1049
    %v1051 = vadd.f32 %v1047, %v1050
    %vm1052 = vweird.f32 %v1017
    %vm1053 = vweird.f32 %v1047
    %vm1054 = vmor %vm1052, %vm1053
    %v1055 = vsel %vm1054, %v1047, %v1051
    %v1056 = vand.u32 2147483647, %v1017
    %vm1057 = vcmp.eq.f32.partialorder %v1056, 8.507059e+37
    %v1058 = vand.u32 %v1017, 2147483648
    %v1059 = vor.u32 1.1754944e-38, %v1058
    %v1060 = vsel %vm1057, %v1059, %v1055
    %v1061 = vrcp.pop %v1018
    %v1062 = vmul.f32 %v1018, %v1061
    %v1063 = vsub.f32 1.0, %v1062
    %v1064 = vmul.f32 %v1061, %v1063
    %v1065 = vadd.f32 %v1061, %v1064
    %vm1066 = vweird.f32 %v1018
    %vm1067 = vweird.f32 %v1061
    %vm1068 = vmor %vm1066, %vm1067
    %v1069 = vsel %vm1068, %v1061, %v1065
    %v1070 = vand.u32 2147483647, %v1018
    %vm1071 = vcmp.eq.f32.partialorder %v1070, 8.507059e+37
    %v1072 = vand.u32 %v1018, 2147483648
    %v1073 = vor.u32 1.1754944e-38, %v1072
    %v1074 = vsel %vm1071, %v1073, %v1069
    %1076 = vset.pattern.permute.xlu0 0
    %1077 = vperm.xlu0 %1076, %v1032
    %v1078 = vpop.permute.xlu0 %1077
    %1081 = vset.pattern.permute.xlu0 0
    %1082 = vperm.xlu0 %1081, %v1046
    %v1083 = vpop.permute.xlu0 %1082
    %1086 = vset.pattern.permute.xlu0 0
    %1087 = vperm.xlu0 %1086, %v1060
    %v1088 = vpop.permute.xlu0 %1087
    %1091 = vset.pattern.permute.xlu0 0
    %1092 = vperm.xlu0 %1091, %v1074
    %v1093 = vpop.permute.xlu0 %1092
    %1095 = vset.pattern.permute.xlu0 1
    %1096 = vperm.xlu0 %1095, %v1032
    %v1097 = vpop.permute.xlu0 %1096
    %1099 = vset.pattern.permute.xlu0 1
    %1100 = vperm.xlu0 %1099, %v1046
    %v1101 = vpop.permute.xlu0 %1100
    %1103 = vset.pattern.permute.xlu0 1
    %1104 = vperm.xlu0 %1103, %v1060
    %v1105 = vpop.permute.xlu0 %1104
    %1107 = vset.pattern.permute.xlu0 1
    %1108 = vperm.xlu0 %1107, %v1074
    %v1109 = vpop.permute.xlu0 %1108
    %1111 = vset.pattern.permute.xlu0 2
    %1112 = vperm.xlu0 %1111, %v1032
    %v1113 = vpop.permute.xlu0 %1112
    %1115 = vset.pattern.permute.xlu0 2
    %1116 = vperm.xlu0 %1115, %v1046
    %v1117 = vpop.permute.xlu0 %1116
    %1119 = vset.pattern.permute.xlu0 2
    %1120 = vperm.xlu0 %1119, %v1060
    %v1121 = vpop.permute.xlu0 %1120
    %1123 = vset.pattern.permute.xlu0 2
    %1124 = vperm.xlu0 %1123, %v1074
    %v1125 = vpop.permute.xlu0 %1124
    %1127 = vset.pattern.permute.xlu0 3
    %1128 = vperm.xlu0 %1127, %v1032
    %v1129 = vpop.permute.xlu0 %1128
    %1131 = vset.pattern.permute.xlu0 3
    %1132 = vperm.xlu0 %1131, %v1046
    %v1133 = vpop.permute.xlu0 %1132
    %1135 = vset.pattern.permute.xlu0 3
    %1136 = vperm.xlu0 %1135, %v1060
    %v1137 = vpop.permute.xlu0 %1136
    %1139 = vset.pattern.permute.xlu0 3
    %1140 = vperm.xlu0 %1139, %v1074
    %v1141 = vpop.permute.xlu0 %1140
    %vm1143 = vcmask 261120
    %v1144 = vsel %vm1143, %v1078, %v1097
    %v1145 = vsel %vm1143, %v1083, %v1101
    %v1146 = vsel %vm1143, %v1088, %v1105
    %v1147 = vsel %vm1143, %v1093, %v1109
    %vm1148 = vcmask 523264
    %v1149 = vsel %vm1148, %v1144, %v1113
    %v1150 = vsel %vm1148, %v1145, %v1117
    %v1151 = vsel %vm1148, %v1146, %v1121
    %v1152 = vsel %vm1148, %v1147, %v1125
    %vm1153 = vcmask 785408
    %v1154 = vsel %vm1153, %v1149, %v1129
    %v1155 = vsel %vm1153, %v1150, %v1133
    %v1156 = vsel %vm1153, %v1151, %v1137
    %v1157 = vsel %vm1153, %v1152, %v1141
    %v1158 = vld [vmem:[#allocation4] sm:$0xff]
    %v1159 = vld [vmem:[#allocation4 + $0x8] sm:$0xff]
    %v1160 = vld [vmem:[#allocation4 + $0x10] sm:$0xff]
    %v1161 = vld [vmem:[#allocation4 + $0x18] sm:$0xff]
    %v1162 = vmul.f32 %v1158, %v1154
    %v1163 = vmul.f32 %v1159, %v1155
    %v1164 = vmul.f32 %v1160, %v1156
    %v1165 = vmul.f32 %v1161, %v1157
    %v1166 = vld [vmem:[%s5] sm:$0x1]
    %v1168 = vperm.slane %v1166, 0
    %v1170 = vadd.f32 %v1162, %v1168
    %v1171 = vadd.f32 %v1163, %v1168
    %v1172 = vadd.f32 %v1164, %v1168
    %v1173 = vadd.f32 %v1165, %v1168
    %v1174 = vld [vmem:[%s6] sm:$0x1]
    %v1176 = vperm.slane %v1174, 0
    %v1178 = vmul.f32 %v1170, %v1176
    %v1179 = vmul.f32 %v1171, %v1176
    %v1180 = vmul.f32 %v1172, %v1176
    %v1181 = vmul.f32 %v1173, %v1176
    %v1182 = vld [vmem:[%s7] sm:$0x1]
    %v1184 = vperm.slane %v1182, 0
    %v1186 = vadd.f32 %v1178, %v1184
    %v1187 = vadd.f32 %v1179, %v1184
    %v1188 = vadd.f32 %v1180, %v1184
    %v1189 = vadd.f32 %v1181, %v1184
    %vm1190 = vcmp.gt.f32.partialorder %v1186, 0.0
    %vm1191 = vcmp.gt.f32.partialorder %v1187, 0.0
    %vm1192 = vcmp.gt.f32.partialorder %v1188, 0.0
    %vm1193 = vcmp.gt.f32.partialorder %v1189, 0.0
    %v1194 = vmin.f32 %v1186, 0.0
    %v1195 = vmin.f32 %v1187, 0.0
    %v1196 = vmin.f32 %v1188, 0.0
    %v1197 = vmin.f32 %v1189, 0.0
    %v1198 = vmul.f32 %v1194, 1.442695
    %v1199 = vpow.pop %v1198
    %v1200 = vmul.f32 %v1195, 1.442695
    %v1201 = vpow.pop %v1200
    %v1202 = vmul.f32 %v1196, 1.442695
    %v1203 = vpow.pop %v1202
    %v1204 = vmul.f32 %v1197, 1.442695
    %v1205 = vpow.pop %v1204
    %v1206 = vsub.f32 %v1199, 1.0
    %v1207 = vsub.f32 %v1201, 1.0
    %v1208 = vsub.f32 %v1203, 1.0
    %v1209 = vsub.f32 %v1205, 1.0
    %v1210 = vsel %vm1190, %v1186, %v1206
    %v1211 = vsel %vm1191, %v1187, %v1207
    %v1212 = vsel %vm1192, %v1188, %v1208
    %v1213 = vsel %vm1193, %v1189, %v1209
    %v1214 = vpack.c.bf16 %v1210, %v1210
    %v1215 = vpack.c.bf16 %v1211, %v1211
    %v1216 = vpack.c.bf16 %v1212, %v1212
    %v1217 = vpack.c.bf16 %v1213, %v1213
    %1218 = vst [vmem:[%s8] sm:$0xf] %v1214
    %1219 = vst [vmem:[%s8 + $0x4] sm:$0xf] %v1215
    %1220 = vst [vmem:[%s8 + $0x8] sm:$0xf] %v1216
    %1221 = vst [vmem:[%s8 + $0xc] sm:$0xf] %v1217
  $region41: #{gat_classifier_forward.4} parent=0 // pred_fallthru
    _
  // Predicated region
  $region42: #{gat_classifier_forward.4} parent=0 // pred_check
    _
  $region43: #{gat_classifier_forward.4} parent=0 // pred_check_branch
    %1223 = sbr.rel (0) target = $region45
  $region44: #{gat_classifier_forward.4} parent=0 // pred_region
    _
  $region45: #{gat_classifier_forward.4} parent=0 // pred_fallthru
    _
  // Predicated region
  $region46: #{gat_classifier_forward.4} parent=0 // pred_check
    _
  $region47: #{gat_classifier_forward.4} parent=0 // pred_check_branch
    %1225 = sbr.rel (0) target = $region49
  $region48: #{gat_classifier_forward.4} parent=0 // pred_region
    _
  $region49: #{gat_classifier_forward.4} parent=0 // pred_fallthru
    _

</llo_original>
